<compile_context>
chip_gen: v5e
topology: v5e:2x2
jax: 0.10.0
libtpu: 0.0.40
codegen_flags: <defaults>
</compile_context>

<pallas_src>
import numpy as np
import jax
import jax.numpy as jnp
from jax.experimental import pallas as pl
from jax.experimental.pallas import tpu as pltpu

LANES = 1024                           # lane-dense output width (multiple of 128)
TARGET_BLOCK_BYTES = 2 * 1024 * 1024   # ~2 MiB per output tile (4 MiB double-buffered)


def _splitmix32(x):
    """SplitMix32 finalizer on uint32 counters (standard avalanche mixer)."""
    x = x + jnp.uint32(0x9E3779B9)
    x = x ^ (x >> jnp.uint32(16))
    x = x * jnp.uint32(0x85EBCA6B)
    x = x ^ (x >> jnp.uint32(13))
    x = x * jnp.uint32(0xC2B2AE35)
    x = x ^ (x >> jnp.uint32(16))
    return x


def _bits_to_uniform(bits):
    """uint32 bits -> float32 uniform in [0, 1) via mantissa bit-stuffing."""
    mantissa = bits >> jnp.uint32(9)                       # 23 random mantissa bits
    one_to_two = jax.lax.bitcast_convert_type(
        mantissa | jnp.uint32(0x3F800000), jnp.float32)    # [1, 2)
    return one_to_two - 1.0


def _learned_init_kernel(seed_ref, mean_ref, std_ref, out_ref):
    # Hoist scalar reads once (no repeated SMEM loads / broadcasts per vreg).
    mean = mean_ref[0]
    std = std_ref[0]
    seed_u = seed_ref[0].astype(jnp.uint32)

    block_rows, lanes = out_ref.shape
    row0 = pl.program_id(0) * block_rows

    # Global flat element index of each output position in this tile.
    rows_iota = jax.lax.broadcasted_iota(jnp.int32, (block_rows, lanes), 0)
    cols_iota = jax.lax.broadcasted_iota(jnp.int32, (block_rows, lanes), 1)
    idx = (rows_iota + row0) * lanes + cols_iota           # int32 linear index

    # Two independent uniform streams per element (counter-based PRNG).
    ctr = idx.astype(jnp.uint32) * jnp.uint32(2) + seed_u * jnp.uint32(0x9E3779B1)
    u1 = 1.0 - _bits_to_uniform(_splitmix32(ctr))                 # (0, 1]
    u2 = _bits_to_uniform(_splitmix32(ctr + jnp.uint32(1)))       # [0, 1)

    # Box-Muller -> standard normal, affine transform, store in target dtype.
    r = jnp.sqrt(-2.0 * jnp.log(u1))
    theta = jnp.float32(2.0 * np.pi) * u2
    noise = r * jnp.cos(theta)
    out_ref[...] = (noise * std + mean).astype(out_ref.dtype)


def learned_initializer(weight, mean, std, seed):
    """JAX/Pallas equivalent of LearnedInitalizer.forward(weight)."""
    orig_shape = weight.shape
    orig_dtype = weight.dtype
    total = int(np.prod(orig_shape))
    itemsize = jnp.dtype(orig_dtype).itemsize

    # Lane-dense 2-D view of the flat output.
    lanes = LANES if total >= LANES else 128
    rows = (total + lanes - 1) // lanes

    # Rows per tile: as many as fit ~TARGET_BLOCK_BYTES (multiple of 8), or all rows.
    max_rows = max(8, (TARGET_BLOCK_BYTES // (lanes * itemsize)) // 8 * 8)
    if rows <= max_rows:
        block_rows = rows                      # single full-extent block in this dim
    else:
        block_rows = max_rows
        rows = ((rows + block_rows - 1) // block_rows) * block_rows  # whole tiles only

    padded = rows * lanes
    grid = (rows // block_rows,)

    out2d = pl.pallas_call(
        _learned_init_kernel,
        out_shape=jax.ShapeDtypeStruct((rows, lanes), orig_dtype),
        grid=grid,
        in_specs=[
            pl.BlockSpec(memory_space=pltpu.MemorySpace.SMEM),  # seed
            pl.BlockSpec(memory_space=pltpu.MemorySpace.SMEM),  # mean
            pl.BlockSpec(memory_space=pltpu.MemorySpace.SMEM),  # std
        ],
        out_specs=pl.BlockSpec((block_rows, lanes), lambda i: (i, 0)),
        compiler_params=pltpu.CompilerParams(
            dimension_semantics=("parallel",)),   # v7x: shard tiles across both TCs
    )(
        jnp.asarray([seed], dtype=jnp.int32),
        jnp.asarray([mean], dtype=jnp.float32),
        jnp.asarray([std], dtype=jnp.float32),
    )

    if padded == total:
        return out2d.reshape(orig_shape)
    # TODO(synk): non-tile-multiple sizes still pay one slice copy here; aligned
    # sizes (like the demo shape) take the zero-copy reshape path above.
    return out2d.reshape(-1)[:total].reshape(orig_shape)


if __name__ == "__main__":
    # Module __init__ defaults: mean=0.0, std=1.0 (learnable scalars).
    mean_param = 0.0
    std_param = 1.0

    # Example "weight" tensor the initializer acts on (NCHW-like conv weight).
    key = jax.random.PRNGKey(0)
    weight = jax.random.normal(key, (2, 4, 16, 16), dtype=jnp.float32)

    out = learned_initializer(weight, mean_param, std_param, seed=1234)
    out = jax.block_until_ready(out)

    # Sanity checks: shape/dtype preserved, values look ~N(mean, std).
    assert out.shape == weight.shape
    assert out.dtype == weight.dtype
    m = float(jnp.mean(out))
    s = float(jnp.std(out))
    assert abs(m - mean_param) < 0.2, f"mean off: {m}"
    assert abs(s - std_param) < 0.2, f"std off: {s}"

    print("KERNEL_OK")
</pallas_src>

<mosaic_0001>
module attributes {stable_mosaic.version = 11 : i64} {
  func.func @_learned_init_kernel(%arg0: i32, %arg1: memref<1xi32, #tpu.memory_space<smem>>, %arg2: memref<1xf32, #tpu.memory_space<smem>>, %arg3: memref<1xf32, #tpu.memory_space<smem>>, %arg4: memref<2x1024xf32, #tpu.memory_space<vmem>>) attributes {dimension_semantics = [#tpu.dimension_semantics<parallel>], iteration_bounds = array<i64: 1>, scalar_prefetch = 0 : i64, scratch_operands = 0 : i64, tpu.core_type = #tpu.core_type<tc>, window_params = [{transform_indices = @transform_0, window_bounds = array<i64: 1>}, {transform_indices = @transform_1, window_bounds = array<i64: 1>}, {transform_indices = @transform_2, window_bounds = array<i64: 1>}, {transform_indices = @transform_3, window_bounds = array<i64: 2, 1024>}]} {
    %c0 = arith.constant 0 : index
    %0 = memref.load %arg2[%c0] : memref<1xf32, #tpu.memory_space<smem>>
    %c0_0 = arith.constant 0 : index
    %1 = memref.load %arg3[%c0_0] : memref<1xf32, #tpu.memory_space<smem>>
    %c0_1 = arith.constant 0 : index
    %2 = memref.load %arg1[%c0_1] : memref<1xi32, #tpu.memory_space<smem>>
    %c2_i32 = arith.constant 2 : i32
    %3 = arith.muli %arg0, %c2_i32 : i32
    %4 = tpu.iota {dimensions = array<i32: 0>} : vector<2x1024xi32>
    %5 = tpu.iota {dimensions = array<i32: 1>} : vector<2x1024xi32>
    %6 = vector.broadcast %3 : i32 to vector<2x1024xi32>
    %7 = arith.addi %4, %6 : vector<2x1024xi32>
    %c1024_i32 = arith.constant 1024 : i32
    %8 = vector.broadcast %c1024_i32 : i32 to vector<2x1024xi32>
    %9 = arith.muli %7, %8 : vector<2x1024xi32>
    %10 = arith.addi %9, %5 : vector<2x1024xi32>
    %c2_i32_2 = arith.constant 2 : i32
    %11 = vector.broadcast %c2_i32_2 : i32 to vector<2x1024xi32>
    %12 = arith.muli %10, %11 : vector<2x1024xi32>
    %c-1640531535_i32 = arith.constant -1640531535 : i32
    %13 = arith.muli %2, %c-1640531535_i32 : i32
    %14 = vector.broadcast %13 : i32 to vector<2x1024xi32>
    %15 = arith.addi %12, %14 : vector<2x1024xi32>
    %c-1640531527_i32 = arith.constant -1640531527 : i32
    %16 = vector.broadcast %c-1640531527_i32 : i32 to vector<2x1024xi32>
    %17 = arith.addi %15, %16 : vector<2x1024xi32>
    %c16_i32 = arith.constant 16 : i32
    %18 = vector.broadcast %c16_i32 : i32 to vector<2x1024xi32>
    %19 = arith.shrui %17, %18 : vector<2x1024xi32>
    %20 = arith.xori %17, %19 : vector<2x1024xi32>
    %c-2048144789_i32 = arith.constant -2048144789 : i32
    %21 = vector.broadcast %c-2048144789_i32 : i32 to vector<2x1024xi32>
    %22 = arith.muli %20, %21 : vector<2x1024xi32>
    %c13_i32 = arith.constant 13 : i32
    %23 = vector.broadcast %c13_i32 : i32 to vector<2x1024xi32>
    %24 = arith.shrui %22, %23 : vector<2x1024xi32>
    %25 = arith.xori %22, %24 : vector<2x1024xi32>
    %c-1028477387_i32 = arith.constant -1028477387 : i32
    %26 = vector.broadcast %c-1028477387_i32 : i32 to vector<2x1024xi32>
    %27 = arith.muli %25, %26 : vector<2x1024xi32>
    %c16_i32_3 = arith.constant 16 : i32
    %28 = vector.broadcast %c16_i32_3 : i32 to vector<2x1024xi32>
    %29 = arith.shrui %27, %28 : vector<2x1024xi32>
    %30 = arith.xori %27, %29 : vector<2x1024xi32>
    %c9_i32 = arith.constant 9 : i32
    %31 = vector.broadcast %c9_i32 : i32 to vector<2x1024xi32>
    %32 = arith.shrui %30, %31 : vector<2x1024xi32>
    %c1065353216_i32 = arith.constant 1065353216 : i32
    %33 = vector.broadcast %c1065353216_i32 : i32 to vector<2x1024xi32>
    %34 = arith.ori %32, %33 : vector<2x1024xi32>
    %35 = tpu.bitcast %34 : vector<2x1024xi32> -> vector<2x1024xf32>
    %cst = arith.constant 1.000000e+00 : f32
    %36 = vector.broadcast %cst : f32 to vector<2x1024xf32>
    %37 = arith.subf %35, %36 : vector<2x1024xf32>
    %cst_4 = arith.constant 1.000000e+00 : f32
    %38 = vector.broadcast %cst_4 : f32 to vector<2x1024xf32>
    %39 = arith.subf %38, %37 : vector<2x1024xf32>
    %c1_i32 = arith.constant 1 : i32
    %40 = vector.broadcast %c1_i32 : i32 to vector<2x1024xi32>
    %41 = arith.addi %15, %40 : vector<2x1024xi32>
    %c-1640531527_i32_5 = arith.constant -1640531527 : i32
    %42 = vector.broadcast %c-1640531527_i32_5 : i32 to vector<2x1024xi32>
    %43 = arith.addi %41, %42 : vector<2x1024xi32>
    %c16_i32_6 = arith.constant 16 : i32
    %44 = vector.broadcast %c16_i32_6 : i32 to vector<2x1024xi32>
    %45 = arith.shrui %43, %44 : vector<2x1024xi32>
    %46 = arith.xori %43, %45 : vector<2x1024xi32>
    %c-2048144789_i32_7 = arith.constant -2048144789 : i32
    %47 = vector.broadcast %c-2048144789_i32_7 : i32 to vector<2x1024xi32>
    %48 = arith.muli %46, %47 : vector<2x1024xi32>
    %c13_i32_8 = arith.constant 13 : i32
    %49 = vector.broadcast %c13_i32_8 : i32 to vector<2x1024xi32>
    %50 = arith.shrui %48, %49 : vector<2x1024xi32>
    %51 = arith.xori %48, %50 : vector<2x1024xi32>
    %c-1028477387_i32_9 = arith.constant -1028477387 : i32
    %52 = vector.broadcast %c-1028477387_i32_9 : i32 to vector<2x1024xi32>
    %53 = arith.muli %51, %52 : vector<2x1024xi32>
    %c16_i32_10 = arith.constant 16 : i32
    %54 = vector.broadcast %c16_i32_10 : i32 to vector<2x1024xi32>
    %55 = arith.shrui %53, %54 : vector<2x1024xi32>
    %56 = arith.xori %53, %55 : vector<2x1024xi32>
    %c9_i32_11 = arith.constant 9 : i32
    %57 = vector.broadcast %c9_i32_11 : i32 to vector<2x1024xi32>
    %58 = arith.shrui %56, %57 : vector<2x1024xi32>
    %c1065353216_i32_12 = arith.constant 1065353216 : i32
    %59 = vector.broadcast %c1065353216_i32_12 : i32 to vector<2x1024xi32>
    %60 = arith.ori %58, %59 : vector<2x1024xi32>
    %61 = tpu.bitcast %60 : vector<2x1024xi32> -> vector<2x1024xf32>
    %cst_13 = arith.constant 1.000000e+00 : f32
    %62 = vector.broadcast %cst_13 : f32 to vector<2x1024xf32>
    %63 = arith.subf %61, %62 : vector<2x1024xf32>
    %64 = math.log %39 : vector<2x1024xf32>
    %cst_14 = arith.constant -2.000000e+00 : f32
    %65 = vector.broadcast %cst_14 : f32 to vector<2x1024xf32>
    %66 = arith.mulf %65, %64 : vector<2x1024xf32>
    %67 = math.sqrt %66 : vector<2x1024xf32>
    %cst_15 = arith.constant 6.28318548 : f32
    %68 = vector.broadcast %cst_15 : f32 to vector<2x1024xf32>
    %69 = arith.mulf %68, %63 : vector<2x1024xf32>
    %70 = math.cos %69 : vector<2x1024xf32>
    %71 = arith.mulf %67, %70 : vector<2x1024xf32>
    %72 = vector.broadcast %1 : f32 to vector<2x1024xf32>
    %73 = arith.mulf %71, %72 : vector<2x1024xf32>
    %74 = vector.broadcast %0 : f32 to vector<2x1024xf32>
    %75 = arith.addf %73, %74 : vector<2x1024xf32>
    %c0_16 = arith.constant 0 : index
    %c0_17 = arith.constant 0 : index
    %76 = vector.load %arg4[%c0_16, %c0_17] : memref<2x1024xf32, #tpu.memory_space<vmem>>, vector<2x1024xf32>
    tpu.vector_store %arg4[%c0_16, %c0_17], %75 {strides = array<i32>} : memref<2x1024xf32, #tpu.memory_space<vmem>>, vector<2x1024xf32>,
    return
  }
  func.func @transform_0(%arg0: i32) -> i32 {
    %c0_i32 = arith.constant 0 : i32
    %c0_i32_0 = arith.constant 0 : i32
    return %c0_i32 : i32
  }
  func.func @transform_1(%arg0: i32) -> i32 {
    %c0_i32 = arith.constant 0 : i32
    %c0_i32_0 = arith.constant 0 : i32
    return %c0_i32 : i32
  }
  func.func @transform_2(%arg0: i32) -> i32 {
    %c0_i32 = arith.constant 0 : i32
    %c0_i32_0 = arith.constant 0 : i32
    return %c0_i32 : i32
  }
  func.func @transform_3(%arg0: i32) -> (i32, i32) {
    %c0_i32 = arith.constant 0 : i32
    %c0_i32_0 = arith.constant 0 : i32
    return %arg0, %c0_i32 : i32, i32
  }
}

</mosaic_0001>

<llo_original>
// kernel: tpu_custom_call.1
$region0: #{tpu_custom_call.1}
  #allocation0 [shape = 'u32[]', space=smem, size = 0x4, offset = 0x4, fixed_abs, tag = 'smem constant byte address 0x4 - core index']
  #allocation1 [shape = 'u32[72,128]{1,0:T(1,128)}', space=vmem, size = 0x9000, scoped, tag = 'internal scratch']
  #allocation2 [shape = 's32[1]{0:T(128)S(6)}', space=smem, size = 0x200, scoped, tag = 'scoped memory for tpu_custom_call.1']
  #allocation3 [shape = 'f32[1]{0:T(128)S(6)}', space=smem, size = 0x200, scoped, tag = 'scoped memory for tpu_custom_call.1']
  #allocation4 [shape = 'f32[1]{0:T(128)S(6)}', space=smem, size = 0x200, scoped, tag = 'scoped memory for tpu_custom_call.1']
  %s0 = inlined_call_operand.<no memory space> [shape: s32[1], index: 0, kind: input, shape index: {}]
  %s1 = inlined_call_operand.<no memory space> [shape: f32[1], index: 1, kind: input, shape index: {}]
  %s2 = inlined_call_operand.<no memory space> [shape: f32[1], index: 2, kind: input, shape index: {}]
  %s3 = inlined_call_operand.hbm [shape: f32[2,1024], index: 3, kind: output, shape index: {}]
  %s4 = sld [smem:[#allocation0]]
  $region22: #{tpu_custom_call.1} parent=0
    _
  %s6 = ssub.s32 1, %s4
  %s7 = scalar_select 0, %s6, %s4
  %8 = sst [smem:[#allocation2]] %s0
  %9 = sst [smem:[#allocation3]] %s1
  %10 = sst [smem:[#allocation4]] %s2
  $region1: #{tpu_custom_call.1} parent=0
    #allocation5 [shape = 'u8[8192]{0}', space=vmem, size = 0x2000, scoped, tag = 'output window, operand 0, single buffered']
    #allocation6 [shape = 's32[1]{0}', space=sflag, size = 0x4, scoped, tag = 'scoped memory for tpu_custom_call.1']
    %11 = vsyncpa [#allocation6], 0
    // Predicated region
    $region2: #{tpu_custom_call.1} parent=1 // pred_check
      _
    $region3: #{tpu_custom_call.1} parent=1 // pred_check_branch
      %13 = sbr.rel (0) target = $region5
    $region4: #{tpu_custom_call.1} parent=1 // pred_region
      _
    $region5: #{tpu_custom_call.1} parent=1 // pred_fallthru
      _
    // Predicated region
    $region6: #{tpu_custom_call.1} parent=1 // pred_check
      _
    $region7: #{tpu_custom_call.1} parent=1 // pred_check_branch
      %15 = sbr.rel (0) target = $region9
    $region8: #{tpu_custom_call.1} parent=1 // pred_region
      _
    $region9: #{tpu_custom_call.1} parent=1 // pred_fallthru
      _
    // Predicated region
    $region10: #{tpu_custom_call.1} parent=1 // pred_check
      _
    $region11: #{tpu_custom_call.1} parent=1 // pred_check_branch
      %17 = sbr.rel (0) target = $region13
    $region12: #{tpu_custom_call.1} parent=1 // pred_region
      _
    $region13: #{tpu_custom_call.1} parent=1 // pred_fallthru
      _
    %s18 = sld [smem:[#allocation3]]
    %s19 = sld [smem:[#allocation4]]
    %s20 = sld [smem:[#allocation2]]
    %s21 = smul.u32 0, 2
    %v22 = vlaneseq
    %v23 = vshrl.u32 %v22, 7
    %v24 = vlaneseq
    %v25 = vand.u32 %v24, 127
    %v26 = vadd.s32 %v25, 128
    %v27 = vadd.s32 %v25, 256
    %v28 = vadd.s32 %v25, 384
    %v29 = vadd.s32 %v25, 512
    %v30 = vadd.s32 %v25, 640
    %v31 = vadd.s32 %v25, 768
    %v32 = vadd.s32 %v25, 896
    %v33 = vstv %s21
    %v34 = vadd.s32 %v23, %v33
    %v35 = vmul.u32 %v34, 1024
    %v36 = vadd.s32 %v35, %v25
    %v37 = vadd.s32 %v35, %v26
    %v38 = vadd.s32 %v35, %v27
    %v39 = vadd.s32 %v35, %v28
    %v40 = vadd.s32 %v35, %v29
    %v41 = vadd.s32 %v35, %v30
    %v42 = vadd.s32 %v35, %v31
    %v43 = vadd.s32 %v35, %v32
    %v44 = vmul.u32 %v36, 2
    %v45 = vmul.u32 %v37, 2
    %v46 = vmul.u32 %v38, 2
    %v47 = vmul.u32 %v39, 2
    %v48 = vmul.u32 %v40, 2
    %v49 = vmul.u32 %v41, 2
    %v50 = vmul.u32 %v42, 2
    %v51 = vmul.u32 %v43, 2
    %s52 = smul.u32 %s20, 2654435761
    %v53 = vstv %s52
    %v54 = vadd.s32 %v44, %v53
    %v55 = vadd.s32 %v45, %v53
    %v56 = vadd.s32 %v46, %v53
    %v57 = vadd.s32 %v47, %v53
    %v58 = vadd.s32 %v48, %v53
    %v59 = vadd.s32 %v49, %v53
    %v60 = vadd.s32 %v50, %v53
    %v61 = vadd.s32 %v51, %v53
    %v62 = vadd.s32 %v54, 2654435769
    %v63 = vadd.s32 %v55, 2654435769
    %v64 = vadd.s32 %v56, 2654435769
    %v65 = vadd.s32 %v57, 2654435769
    %v66 = vadd.s32 %v58, 2654435769
    %v67 = vadd.s32 %v59, 2654435769
    %v68 = vadd.s32 %v60, 2654435769
    %v69 = vadd.s32 %v61, 2654435769
    %v70 = vshrl.u32 %v62, 16
    %v71 = vshrl.u32 %v63, 16
    %v72 = vshrl.u32 %v64, 16
    %v73 = vshrl.u32 %v65, 16
    %v74 = vshrl.u32 %v66, 16
    %v75 = vshrl.u32 %v67, 16
    %v76 = vshrl.u32 %v68, 16
    %v77 = vshrl.u32 %v69, 16
    %v78 = vxor.u32 %v62, %v70
    %v79 = vxor.u32 %v63, %v71
    %v80 = vxor.u32 %v64, %v72
    %v81 = vxor.u32 %v65, %v73
    %v82 = vxor.u32 %v66, %v74
    %v83 = vxor.u32 %v67, %v75
    %v84 = vxor.u32 %v68, %v76
    %v85 = vxor.u32 %v69, %v77
    %v86 = vmul.u32 %v78, 2246822507
    %v87 = vmul.u32 %v79, 2246822507
    %v88 = vmul.u32 %v80, 2246822507
    %v89 = vmul.u32 %v81, 2246822507
    %v90 = vmul.u32 %v82, 2246822507
    %v91 = vmul.u32 %v83, 2246822507
    %v92 = vmul.u32 %v84, 2246822507
    %v93 = vmul.u32 %v85, 2246822507
    %v94 = vshrl.u32 %v86, 13
    %v95 = vshrl.u32 %v87, 13
    %v96 = vshrl.u32 %v88, 13
    %v97 = vshrl.u32 %v89, 13
    %v98 = vshrl.u32 %v90, 13
    %v99 = vshrl.u32 %v91, 13
    %v100 = vshrl.u32 %v92, 13
    %v101 = vshrl.u32 %v93, 13
    %v102 = vxor.u32 %v86, %v94
    %v103 = vxor.u32 %v87, %v95
    %v104 = vxor.u32 %v88, %v96
    %v105 = vxor.u32 %v89, %v97
    %v106 = vxor.u32 %v90, %v98
    %v107 = vxor.u32 %v91, %v99
    %v108 = vxor.u32 %v92, %v100
    %v109 = vxor.u32 %v93, %v101
    %v110 = vmul.u32 %v102, 3266489909
    %v111 = vmul.u32 %v103, 3266489909
    %v112 = vmul.u32 %v104, 3266489909
    %v113 = vmul.u32 %v105, 3266489909
    %v114 = vmul.u32 %v106, 3266489909
    %v115 = vmul.u32 %v107, 3266489909
    %v116 = vmul.u32 %v108, 3266489909
    %v117 = vmul.u32 %v109, 3266489909
    %v118 = vshrl.u32 %v110, 16
    %v119 = vshrl.u32 %v111, 16
    %v120 = vshrl.u32 %v112, 16
    %v121 = vshrl.u32 %v113, 16
    %v122 = vshrl.u32 %v114, 16
    %v123 = vshrl.u32 %v115, 16
    %v124 = vshrl.u32 %v116, 16
    %v125 = vshrl.u32 %v117, 16
    %v126 = vxor.u32 %v110, %v118
    %v127 = vxor.u32 %v111, %v119
    %v128 = vxor.u32 %v112, %v120
    %v129 = vxor.u32 %v113, %v121
    %v130 = vxor.u32 %v114, %v122
    %v131 = vxor.u32 %v115, %v123
    %v132 = vxor.u32 %v116, %v124
    %v133 = vxor.u32 %v117, %v125
    %v134 = vshrl.u32 %v126, 9
    %v135 = vshrl.u32 %v127, 9
    %v136 = vshrl.u32 %v128, 9
    %v137 = vshrl.u32 %v129, 9
    %v138 = vshrl.u32 %v130, 9
    %v139 = vshrl.u32 %v131, 9
    %v140 = vshrl.u32 %v132, 9
    %v141 = vshrl.u32 %v133, 9
    %v142 = vor.u32 %v134, 1065353216
    %v143 = vor.u32 %v135, 1065353216
    %v144 = vor.u32 %v136, 1065353216
    %v145 = vor.u32 %v137, 1065353216
    %v146 = vor.u32 %v138, 1065353216
    %v147 = vor.u32 %v139, 1065353216
    %v148 = vor.u32 %v140, 1065353216
    %v149 = vor.u32 %v141, 1065353216
    %v158 = vsub.f32 %v142, 1.0
    %v159 = vsub.f32 %v143, 1.0
    %v160 = vsub.f32 %v144, 1.0
    %v161 = vsub.f32 %v145, 1.0
    %v162 = vsub.f32 %v146, 1.0
    %v163 = vsub.f32 %v147, 1.0
    %v164 = vsub.f32 %v148, 1.0
    %v165 = vsub.f32 %v149, 1.0
    %v166 = vsub.f32 1.0, %v158
    %v167 = vsub.f32 1.0, %v159
    %v168 = vsub.f32 1.0, %v160
    %v169 = vsub.f32 1.0, %v161
    %v170 = vsub.f32 1.0, %v162
    %v171 = vsub.f32 1.0, %v163
    %v172 = vsub.f32 1.0, %v164
    %v173 = vsub.f32 1.0, %v165
    %v174 = vadd.s32 %v54, 1
    %v175 = vadd.s32 %v55, 1
    %v176 = vadd.s32 %v56, 1
    %v177 = vadd.s32 %v57, 1
    %v178 = vadd.s32 %v58, 1
    %v179 = vadd.s32 %v59, 1
    %v180 = vadd.s32 %v60, 1
    %v181 = vadd.s32 %v61, 1
    %v182 = vadd.s32 %v174, 2654435769
    %v183 = vadd.s32 %v175, 2654435769
    %v184 = vadd.s32 %v176, 2654435769
    %v185 = vadd.s32 %v177, 2654435769
    %v186 = vadd.s32 %v178, 2654435769
    %v187 = vadd.s32 %v179, 2654435769
    %v188 = vadd.s32 %v180, 2654435769
    %v189 = vadd.s32 %v181, 2654435769
    %v190 = vshrl.u32 %v182, 16
    %v191 = vshrl.u32 %v183, 16
    %v192 = vshrl.u32 %v184, 16
    %v193 = vshrl.u32 %v185, 16
    %v194 = vshrl.u32 %v186, 16
    %v195 = vshrl.u32 %v187, 16
    %v196 = vshrl.u32 %v188, 16
    %v197 = vshrl.u32 %v189, 16
    %v198 = vxor.u32 %v182, %v190
    %v199 = vxor.u32 %v183, %v191
    %v200 = vxor.u32 %v184, %v192
    %v201 = vxor.u32 %v185, %v193
    %v202 = vxor.u32 %v186, %v194
    %v203 = vxor.u32 %v187, %v195
    %v204 = vxor.u32 %v188, %v196
    %v205 = vxor.u32 %v189, %v197
    %v206 = vmul.u32 %v198, 2246822507
    %v207 = vmul.u32 %v199, 2246822507
    %v208 = vmul.u32 %v200, 2246822507
    %v209 = vmul.u32 %v201, 2246822507
    %v210 = vmul.u32 %v202, 2246822507
    %v211 = vmul.u32 %v203, 2246822507
    %v212 = vmul.u32 %v204, 2246822507
    %v213 = vmul.u32 %v205, 2246822507
    %v214 = vshrl.u32 %v206, 13
    %v215 = vshrl.u32 %v207, 13
    %v216 = vshrl.u32 %v208, 13
    %v217 = vshrl.u32 %v209, 13
    %v218 = vshrl.u32 %v210, 13
    %v219 = vshrl.u32 %v211, 13
    %v220 = vshrl.u32 %v212, 13
    %v221 = vshrl.u32 %v213, 13
    %v222 = vxor.u32 %v206, %v214
    %v223 = vxor.u32 %v207, %v215
    %v224 = vxor.u32 %v208, %v216
    %v225 = vxor.u32 %v209, %v217
    %v226 = vxor.u32 %v210, %v218
    %v227 = vxor.u32 %v211, %v219
    %v228 = vxor.u32 %v212, %v220
    %v229 = vxor.u32 %v213, %v221
    %v230 = vmul.u32 %v222, 3266489909
    %v231 = vmul.u32 %v223, 3266489909
    %v232 = vmul.u32 %v224, 3266489909
    %v233 = vmul.u32 %v225, 3266489909
    %v234 = vmul.u32 %v226, 3266489909
    %v235 = vmul.u32 %v227, 3266489909
    %v236 = vmul.u32 %v228, 3266489909
    %v237 = vmul.u32 %v229, 3266489909
    %v238 = vshrl.u32 %v230, 16
    %v239 = vshrl.u32 %v231, 16
    %v240 = vshrl.u32 %v232, 16
    %v241 = vshrl.u32 %v233, 16
    %v242 = vshrl.u32 %v234, 16
    %v243 = vshrl.u32 %v235, 16
    %v244 = vshrl.u32 %v236, 16
    %v245 = vshrl.u32 %v237, 16
    %v246 = vxor.u32 %v230, %v238
    %v247 = vxor.u32 %v231, %v239
    %v248 = vxor.u32 %v232, %v240
    %v249 = vxor.u32 %v233, %v241
    %v250 = vxor.u32 %v234, %v242
    %v251 = vxor.u32 %v235, %v243
    %v252 = vxor.u32 %v236, %v244
    %v253 = vxor.u32 %v237, %v245
    %v254 = vshrl.u32 %v246, 9
    %v255 = vshrl.u32 %v247, 9
    %v256 = vshrl.u32 %v248, 9
    %v257 = vshrl.u32 %v249, 9
    %v258 = vshrl.u32 %v250, 9
    %v259 = vshrl.u32 %v251, 9
    %v260 = vshrl.u32 %v252, 9
    %v261 = vshrl.u32 %v253, 9
    %v262 = vor.u32 %v254, 1065353216
    %v263 = vor.u32 %v255, 1065353216
    %v264 = vor.u32 %v256, 1065353216
    %v265 = vor.u32 %v257, 1065353216
    %v266 = vor.u32 %v258, 1065353216
    %v267 = vor.u32 %v259, 1065353216
    %v268 = vor.u32 %v260, 1065353216
    %v269 = vor.u32 %v261, 1065353216
    %v278 = vsub.f32 %v262, 1.0
    %v279 = vsub.f32 %v263, 1.0
    %v280 = vsub.f32 %v264, 1.0
    %v281 = vsub.f32 %v265, 1.0
    %v282 = vsub.f32 %v266, 1.0
    %v283 = vsub.f32 %v267, 1.0
    %v284 = vsub.f32 %v268, 1.0
    %v285 = vsub.f32 %v269, 1.0
    %v286 = vlog2.pop %v166
    %v287 = vmul.f32 %v286, 0.6931472
    %v288 = vlog2.pop %v167
    %v289 = vmul.f32 %v288, 0.6931472
    %v290 = vlog2.pop %v168
    %v291 = vmul.f32 %v290, 0.6931472
    %v292 = vlog2.pop %v169
    %v293 = vmul.f32 %v292, 0.6931472
    %v294 = vlog2.pop %v170
    %v295 = vmul.f32 %v294, 0.6931472
    %v296 = vlog2.pop %v171
    %v297 = vmul.f32 %v296, 0.6931472
    %v298 = vlog2.pop %v172
    %v299 = vmul.f32 %v298, 0.6931472
    %v300 = vlog2.pop %v173
    %v301 = vmul.f32 %v300, 0.6931472
    %v302 = vmul.f32 %v287, -2.0
    %v303 = vmul.f32 %v289, -2.0
    %v304 = vmul.f32 %v291, -2.0
    %v305 = vmul.f32 %v293, -2.0
    %v306 = vmul.f32 %v295, -2.0
    %v307 = vmul.f32 %v297, -2.0
    %v308 = vmul.f32 %v299, -2.0
    %v309 = vmul.f32 %v301, -2.0
    %v310 = vrsqrt.pop %v302
    %v311 = vmul.f32 %v310, %v302
    %v312 = vmul.f32 %v311, %v310
    %v313 = vmul.f32 0.5, %v312
    %v314 = vsub.f32 1.5, %v313
    %v315 = vmul.f32 %v310, %v314
    %v316 = vmul.f32 %v302, %v315
    %vm317 = vcmp.eq.f32.partialorder %v302, inf
    %v318 = vsel %vm317, %v302, %v316
    %vm319 = vcmp.eq.f32.partialorder %v302, 0.0
    %v320 = vand.u32 %v302, 2147483648
    %v321 = vsel %vm319, %v320, %v318
    %v322 = vrsqrt.pop %v303
    %v323 = vmul.f32 %v322, %v303
    %v324 = vmul.f32 %v323, %v322
    %v325 = vmul.f32 0.5, %v324
    %v326 = vsub.f32 1.5, %v325
    %v327 = vmul.f32 %v322, %v326
    %v328 = vmul.f32 %v303, %v327
    %vm329 = vcmp.eq.f32.partialorder %v303, inf
    %v330 = vsel %vm329, %v303, %v328
    %vm331 = vcmp.eq.f32.partialorder %v303, 0.0
    %v332 = vand.u32 %v303, 2147483648
    %v333 = vsel %vm331, %v332, %v330
    %v334 = vrsqrt.pop %v304
    %v335 = vmul.f32 %v334, %v304
    %v336 = vmul.f32 %v335, %v334
    %v337 = vmul.f32 0.5, %v336
    %v338 = vsub.f32 1.5, %v337
    %v339 = vmul.f32 %v334, %v338
    %v340 = vmul.f32 %v304, %v339
    %vm341 = vcmp.eq.f32.partialorder %v304, inf
    %v342 = vsel %vm341, %v304, %v340
    %vm343 = vcmp.eq.f32.partialorder %v304, 0.0
    %v344 = vand.u32 %v304, 2147483648
    %v345 = vsel %vm343, %v344, %v342
    %v346 = vrsqrt.pop %v305
    %v347 = vmul.f32 %v346, %v305
    %v348 = vmul.f32 %v347, %v346
    %v349 = vmul.f32 0.5, %v348
    %v350 = vsub.f32 1.5, %v349
    %v351 = vmul.f32 %v346, %v350
    %v352 = vmul.f32 %v305, %v351
    %vm353 = vcmp.eq.f32.partialorder %v305, inf
    %v354 = vsel %vm353, %v305, %v352
    %vm355 = vcmp.eq.f32.partialorder %v305, 0.0
    %v356 = vand.u32 %v305, 2147483648
    %v357 = vsel %vm355, %v356, %v354
    %v358 = vrsqrt.pop %v306
    %v359 = vmul.f32 %v358, %v306
    %v360 = vmul.f32 %v359, %v358
    %v361 = vmul.f32 0.5, %v360
    %v362 = vsub.f32 1.5, %v361
    %v363 = vmul.f32 %v358, %v362
    %v364 = vmul.f32 %v306, %v363
    %vm365 = vcmp.eq.f32.partialorder %v306, inf
    %v366 = vsel %vm365, %v306, %v364
    %vm367 = vcmp.eq.f32.partialorder %v306, 0.0
    %v368 = vand.u32 %v306, 2147483648
    %v369 = vsel %vm367, %v368, %v366
    %v370 = vrsqrt.pop %v307
    %v371 = vmul.f32 %v370, %v307
    %v372 = vmul.f32 %v371, %v370
    %v373 = vmul.f32 0.5, %v372
    %v374 = vsub.f32 1.5, %v373
    %v375 = vmul.f32 %v370, %v374
    %v376 = vmul.f32 %v307, %v375
    %vm377 = vcmp.eq.f32.partialorder %v307, inf
    %v378 = vsel %vm377, %v307, %v376
    %vm379 = vcmp.eq.f32.partialorder %v307, 0.0
    %v380 = vand.u32 %v307, 2147483648
    %v381 = vsel %vm379, %v380, %v378
    %v382 = vrsqrt.pop %v308
    %v383 = vmul.f32 %v382, %v308
    %v384 = vmul.f32 %v383, %v382
    %v385 = vmul.f32 0.5, %v384
    %v386 = vsub.f32 1.5, %v385
    %v387 = vmul.f32 %v382, %v386
    %v388 = vmul.f32 %v308, %v387
    %vm389 = vcmp.eq.f32.partialorder %v308, inf
    %v390 = vsel %vm389, %v308, %v388
    %vm391 = vcmp.eq.f32.partialorder %v308, 0.0
    %v392 = vand.u32 %v308, 2147483648
    %v393 = vsel %vm391, %v392, %v390
    %v394 = vrsqrt.pop %v309
    %v395 = vmul.f32 %v394, %v309
    %v396 = vmul.f32 %v395, %v394
    %v397 = vmul.f32 0.5, %v396
    %v398 = vsub.f32 1.5, %v397
    %v399 = vmul.f32 %v394, %v398
    %v400 = vmul.f32 %v309, %v399
    %vm401 = vcmp.eq.f32.partialorder %v309, inf
    %v402 = vsel %vm401, %v309, %v400
    %vm403 = vcmp.eq.f32.partialorder %v309, 0.0
    %v404 = vand.u32 %v309, 2147483648
    %v405 = vsel %vm403, %v404, %v402
    %v406 = vmul.f32 %v278, 6.2831855
    %v407 = vmul.f32 %v279, 6.2831855
    %v408 = vmul.f32 %v280, 6.2831855
    %v409 = vmul.f32 %v281, 6.2831855
    %v410 = vmul.f32 %v282, 6.2831855
    %v411 = vmul.f32 %v283, 6.2831855
    %v412 = vmul.f32 %v284, 6.2831855
    %v413 = vmul.f32 %v285, 6.2831855
    %v414 = vand.u32 2147483647, %v406
    %vm415 = vcmp.le.f32.partialorder %v414, 0.7853982
    %vm416 = vcmp.lt.s32.totalorder %v406, 0
    %v417 = vand.u32 %v406, 2139095040
    %v418 = vshrl.u32 %v417, 23
    %v419 = vsub.s32 %v418, 127
    %v420 = vand.u32 2147483647, %v406
    %v421 = vand.u32 %v420, 8388607
    %v422 = vor.u32 %v421, 8388608
    %v423 = vsub.s32 0, %v422
    %v424 = vadd.s32 %v419, 1
    %vm425 = vcmp.gt.s32.totalorder %v424, 0
    %v426 = vsel %vm425, %v424, 0
    %v427 = vshrl.u32 %v426, 5
    %v428 = vand.u32 %v426, 31
    %v429 = vsub.s32 32, %v428
    %v430 = vshrl.u32 683565275, %v429
    %v431 = vshll.u32 683565275, %v428
    %v432 = vshrl.u32 2475754826, %v429
    %v433 = vor.u32 %v431, %v432
    %v434 = vshll.u32 2475754826, %v428
    %v435 = vshrl.u32 2131351028, %v429
    %v436 = vor.u32 %v434, %v435
    %v437 = vshll.u32 2131351028, %v428
    %v438 = vshrl.u32 2102212464, %v429
    %v439 = vor.u32 %v437, %v438
    %v440 = vshll.u32 2102212464, %v428
    %v441 = vshrl.u32 920167782, %v429
    %v442 = vor.u32 %v440, %v441
    %v443 = vshll.u32 920167782, %v428
    %v444 = vshrl.u32 1326507024, %v429
    %v445 = vor.u32 %v443, %v444
    %vm446 = vcmp.lt.s32.totalorder %v427, 1
    %vm447 = vcmp.lt.s32.totalorder %v427, 2
    %vm448 = vcmp.lt.s32.totalorder %v427, 3
    %vm449 = vcmp.lt.s32.totalorder %v427, 4
    %v450 = vsel %vm446, %v430, %v433
    %v451 = vsel %vm449, %v439, 2102212464
    %v452 = vsel %vm448, %v436, %v451
    %v453 = vsel %vm447, %v450, %v452
    %v454 = vsel %vm446, %v433, %v436
    %v455 = vsel %vm449, %v442, 920167782
    %v456 = vsel %vm448, %v439, %v455
    %v457 = vsel %vm447, %v454, %v456
    %v458 = vsel %vm446, %v436, %v439
    %v459 = vsel %vm449, %v445, 1326507024
    %v460 = vsel %vm448, %v442, %v459
    %v461 = vsel %vm447, %v458, %v460
    %v462 = vshll.u32 %v422, 8
    %v463 = vand.u32 %v462, 65535
    %v464 = vshrl.u32 %v462, 16
    %v465 = vand.u32 %v461, 65535
    %v466 = vshrl.u32 %v461, 16
    %v467 = vmul.u32 %v463, %v465
    %v468 = vmul.u32 %v463, %v466
    %v469 = vmul.u32 %v464, %v465
    %v470 = vmul.u32 %v464, %v466
    %v471 = vshll.u32 %v468, 16
    %v472 = vshrl.u32 %v468, 16
    %v473 = vshll.u32 %v469, 16
    %v474 = vshrl.u32 %v469, 16
    %vm475 = vc.u32 %v467, %v471
    %v476 = vsel %vm475, 1, 0
    %v477 = vadd.s32 %v467, %v471
    %v478 = vadd.s32 %v470, %v476
    %vm479 = vc.u32 %v477, %v473
    %v480 = vsel %vm479, 1, 0
    %v481 = vadd.s32 %v477, %v473
    %v482 = vadd.s32 %v478, %v480
    %v483 = vadd.s32 %v482, %v472
    %v484 = vadd.s32 %v483, %v474
    %v485 = vand.u32 %v462, 65535
    %v486 = vshrl.u32 %v462, 16
    %v487 = vand.u32 %v457, 65535
    %v488 = vshrl.u32 %v457, 16
    %v489 = vmul.u32 %v485, %v487
    %v490 = vmul.u32 %v485, %v488
    %v491 = vmul.u32 %v486, %v487
    %v492 = vmul.u32 %v486, %v488
    %v493 = vshll.u32 %v490, 16
    %v494 = vshrl.u32 %v490, 16
    %v495 = vshll.u32 %v491, 16
    %v496 = vshrl.u32 %v491, 16
    %vm497 = vc.u32 %v489, %v493
    %v498 = vsel %vm497, 1, 0
    %v499 = vadd.s32 %v489, %v493
    %v500 = vadd.s32 %v492, %v498
    %vm501 = vc.u32 %v499, %v495
    %v502 = vsel %vm501, 1, 0
    %v503 = vadd.s32 %v499, %v495
    %v504 = vadd.s32 %v500, %v502
    %v505 = vadd.s32 %v504, %v494
    %v506 = vadd.s32 %v505, %v496
    %v507 = vmul.u32 %v462, %v453
    %v508 = vadd.s32 %v484, %v503
    %vm509 = vc.u32 %v484, %v503
    %v510 = vadd.s32 %v506, 1
    %v511 = vsel %vm509, %v510, %v506
    %v512 = vadd.s32 %v507, %v511
    %v513 = vadd.s32 %v512, 536870912
    %v514 = vshrl.u32 %v513, 30
    %v515 = vshll.u32 %v514, 30
    %v516 = vsub.s32 %v512, %v515
    %vm517 = vcmp.lt.s32.totalorder %v516, 0
    %v518 = vsub.s32 0, %v516
    %v519 = vsel %vm517, %v518, %v516
    %v520 = vclz %v519
    %v521 = vsub.s32 %v520, 2
    %vm522 = vcmp.gt.s32.totalorder 0, %v521
    %v523 = vsel %vm522, 0, %v521
    %v524 = vsub.s32 32, %v523
    %v525 = vshll.u32 %v516, %v523
    %v526 = vshrl.u32 %v508, %v524
    %v527 = vor.u32 %v525, %v526
    %v528 = vsub.s32 4294967266, %v523
    %v529 = vadd.s32 %v528, 127
    %v530 = vshll.u32 %v529, 23
    %v531 = vor.u32 4788187, %v530
    %v532 = vand.u32 2147483647, %v531
    %v534 = vcvt.s32.f32 %v527
    %v535 = vmul.f32 %v534, %v532
    %v536 = vxor.u32 %v535, 2147483648
    %v537 = vsel %vm416, %v536, %v535
    %v538 = vsub.s32 4, %v514
    %v539 = vsel %vm416, %v538, %v514
    %v540 = vsel %vm415, %v406, %v537
    %v541 = vsel %vm415, 0, %v539
    %v542 = vmul.f32 %v540, %v540
    %v543 = vmul.f32 %v542, -0.001358992
    %v544 = vadd.f32 %v543, 0.041655596
    %v545 = vmul.f32 %v542, %v544
    %v546 = vadd.f32 %v545, -0.4999988
    %v547 = vmul.f32 %v542, %v546
    %v548 = vadd.f32 1.0, %v547
    %v549 = vmul.f32 %v540, %v540
    %v550 = vmul.f32 %v549, -0.00019511016
    %v551 = vadd.f32 %v550, 0.008332121
    %v552 = vmul.f32 %v549, %v551
    %v553 = vadd.f32 %v552, -0.16666654
    %v554 = vmul.f32 %v549, %v553
    %v555 = vadd.f32 %v554, 1.0
    %v556 = vmul.f32 %v555, %v540
    %vm557 = vweird.f32 %v406
    %v558 = vand.u32 %v541, 3
    %vm559 = vcmp.lt.s32.totalorder %v558, 2
    %vm560 = vcmp.eq.s32.totalorder %v558, 0
    %v561 = vxor.u32 %v556, 2147483648
    %v562 = vsel %vm560, %v548, %v561
    %vm563 = vcmp.eq.s32.totalorder %v558, 2
    %v564 = vxor.u32 %v548, 2147483648
    %v565 = vsel %vm563, %v564, %v556
    %v566 = vsel %vm559, %v562, %v565
    %v567 = vsel %vm557, nan, %v566
    %v568 = vand.u32 2147483647, %v407
    %vm569 = vcmp.le.f32.partialorder %v568, 0.7853982
    %vm570 = vcmp.lt.s32.totalorder %v407, 0
    %v571 = vand.u32 %v407, 2139095040
    %v572 = vshrl.u32 %v571, 23
    %v573 = vsub.s32 %v572, 127
    %v574 = vand.u32 2147483647, %v407
    %v575 = vand.u32 %v574, 8388607
    %v576 = vor.u32 %v575, 8388608
    %v577 = vsub.s32 0, %v576
    %v578 = vadd.s32 %v573, 1
    %vm579 = vcmp.gt.s32.totalorder %v578, 0
    %v580 = vsel %vm579, %v578, 0
    %v581 = vshrl.u32 %v580, 5
    %v582 = vand.u32 %v580, 31
    %v583 = vsub.s32 32, %v582
    %v584 = vshrl.u32 683565275, %v583
    %v585 = vshll.u32 683565275, %v582
    %v586 = vshrl.u32 2475754826, %v583
    %v587 = vor.u32 %v585, %v586
    %v588 = vshll.u32 2475754826, %v582
    %v589 = vshrl.u32 2131351028, %v583
    %v590 = vor.u32 %v588, %v589
    %v591 = vshll.u32 2131351028, %v582
    %v592 = vshrl.u32 2102212464, %v583
    %v593 = vor.u32 %v591, %v592
    %v594 = vshll.u32 2102212464, %v582
    %v595 = vshrl.u32 920167782, %v583
    %v596 = vor.u32 %v594, %v595
    %v597 = vshll.u32 920167782, %v582
    %v598 = vshrl.u32 1326507024, %v583
    %v599 = vor.u32 %v597, %v598
    %vm600 = vcmp.lt.s32.totalorder %v581, 1
    %vm601 = vcmp.lt.s32.totalorder %v581, 2
    %vm602 = vcmp.lt.s32.totalorder %v581, 3
    %vm603 = vcmp.lt.s32.totalorder %v581, 4
    %v604 = vsel %vm600, %v584, %v587
    %v605 = vsel %vm603, %v593, 2102212464
    %v606 = vsel %vm602, %v590, %v605
    %v607 = vsel %vm601, %v604, %v606
    %v608 = vsel %vm600, %v587, %v590
    %v609 = vsel %vm603, %v596, 920167782
    %v610 = vsel %vm602, %v593, %v609
    %v611 = vsel %vm601, %v608, %v610
    %v612 = vsel %vm600, %v590, %v593
    %v613 = vsel %vm603, %v599, 1326507024
    %v614 = vsel %vm602, %v596, %v613
    %v615 = vsel %vm601, %v612, %v614
    %v616 = vshll.u32 %v576, 8
    %v617 = vand.u32 %v616, 65535
    %v618 = vshrl.u32 %v616, 16
    %v619 = vand.u32 %v615, 65535
    %v620 = vshrl.u32 %v615, 16
    %v621 = vmul.u32 %v617, %v619
    %v622 = vmul.u32 %v617, %v620
    %v623 = vmul.u32 %v618, %v619
    %v624 = vmul.u32 %v618, %v620
    %v625 = vshll.u32 %v622, 16
    %v626 = vshrl.u32 %v622, 16
    %v627 = vshll.u32 %v623, 16
    %v628 = vshrl.u32 %v623, 16
    %vm629 = vc.u32 %v621, %v625
    %v630 = vsel %vm629, 1, 0
    %v631 = vadd.s32 %v621, %v625
    %v632 = vadd.s32 %v624, %v630
    %vm633 = vc.u32 %v631, %v627
    %v634 = vsel %vm633, 1, 0
    %v635 = vadd.s32 %v631, %v627
    %v636 = vadd.s32 %v632, %v634
    %v637 = vadd.s32 %v636, %v626
    %v638 = vadd.s32 %v637, %v628
    %v639 = vand.u32 %v616, 65535
    %v640 = vshrl.u32 %v616, 16
    %v641 = vand.u32 %v611, 65535
    %v642 = vshrl.u32 %v611, 16
    %v643 = vmul.u32 %v639, %v641
    %v644 = vmul.u32 %v639, %v642
    %v645 = vmul.u32 %v640, %v641
    %v646 = vmul.u32 %v640, %v642
    %v647 = vshll.u32 %v644, 16
    %v648 = vshrl.u32 %v644, 16
    %v649 = vshll.u32 %v645, 16
    %v650 = vshrl.u32 %v645, 16
    %vm651 = vc.u32 %v643, %v647
    %v652 = vsel %vm651, 1, 0
    %v653 = vadd.s32 %v643, %v647
    %v654 = vadd.s32 %v646, %v652
    %vm655 = vc.u32 %v653, %v649
    %v656 = vsel %vm655, 1, 0
    %v657 = vadd.s32 %v653, %v649
    %v658 = vadd.s32 %v654, %v656
    %v659 = vadd.s32 %v658, %v648
    %v660 = vadd.s32 %v659, %v650
    %v661 = vmul.u32 %v616, %v607
    %v662 = vadd.s32 %v638, %v657
    %vm663 = vc.u32 %v638, %v657
    %v664 = vadd.s32 %v660, 1
    %v665 = vsel %vm663, %v664, %v660
    %v666 = vadd.s32 %v661, %v665
    %v667 = vadd.s32 %v666, 536870912
    %v668 = vshrl.u32 %v667, 30
    %v669 = vshll.u32 %v668, 30
    %v670 = vsub.s32 %v666, %v669
    %vm671 = vcmp.lt.s32.totalorder %v670, 0
    %v672 = vsub.s32 0, %v670
    %v673 = vsel %vm671, %v672, %v670
    %v674 = vclz %v673
    %v675 = vsub.s32 %v674, 2
    %vm676 = vcmp.gt.s32.totalorder 0, %v675
    %v677 = vsel %vm676, 0, %v675
    %v678 = vsub.s32 32, %v677
    %v679 = vshll.u32 %v670, %v677
    %v680 = vshrl.u32 %v662, %v678
    %v681 = vor.u32 %v679, %v680
    %v682 = vsub.s32 4294967266, %v677
    %v683 = vadd.s32 %v682, 127
    %v684 = vshll.u32 %v683, 23
    %v685 = vor.u32 4788187, %v684
    %v686 = vand.u32 2147483647, %v685
    %v688 = vcvt.s32.f32 %v681
    %v689 = vmul.f32 %v688, %v686
    %v690 = vxor.u32 %v689, 2147483648
    %v691 = vsel %vm570, %v690, %v689
    %v692 = vsub.s32 4, %v668
    %v693 = vsel %vm570, %v692, %v668
    %v694 = vsel %vm569, %v407, %v691
    %v695 = vsel %vm569, 0, %v693
    %v696 = vmul.f32 %v694, %v694
    %v697 = vmul.f32 %v696, -0.001358992
    %v698 = vadd.f32 %v697, 0.041655596
    %v699 = vmul.f32 %v696, %v698
    %v700 = vadd.f32 %v699, -0.4999988
    %v701 = vmul.f32 %v696, %v700
    %v702 = vadd.f32 1.0, %v701
    %v703 = vmul.f32 %v694, %v694
    %v704 = vmul.f32 %v703, -0.00019511016
    %v705 = vadd.f32 %v704, 0.008332121
    %v706 = vmul.f32 %v703, %v705
    %v707 = vadd.f32 %v706, -0.16666654
    %v708 = vmul.f32 %v703, %v707
    %v709 = vadd.f32 %v708, 1.0
    %v710 = vmul.f32 %v709, %v694
    %vm711 = vweird.f32 %v407
    %v712 = vand.u32 %v695, 3
    %vm713 = vcmp.lt.s32.totalorder %v712, 2
    %vm714 = vcmp.eq.s32.totalorder %v712, 0
    %v715 = vxor.u32 %v710, 2147483648
    %v716 = vsel %vm714, %v702, %v715
    %vm717 = vcmp.eq.s32.totalorder %v712, 2
    %v718 = vxor.u32 %v702, 2147483648
    %v719 = vsel %vm717, %v718, %v710
    %v720 = vsel %vm713, %v716, %v719
    %v721 = vsel %vm711, nan, %v720
    %v722 = vand.u32 2147483647, %v408
    %vm723 = vcmp.le.f32.partialorder %v722, 0.7853982
    %vm724 = vcmp.lt.s32.totalorder %v408, 0
    %v725 = vand.u32 %v408, 2139095040
    %v726 = vshrl.u32 %v725, 23
    %v727 = vsub.s32 %v726, 127
    %v728 = vand.u32 2147483647, %v408
    %v729 = vand.u32 %v728, 8388607
    %v730 = vor.u32 %v729, 8388608
    %v731 = vsub.s32 0, %v730
    %v732 = vadd.s32 %v727, 1
    %vm733 = vcmp.gt.s32.totalorder %v732, 0
    %v734 = vsel %vm733, %v732, 0
    %v735 = vshrl.u32 %v734, 5
    %v736 = vand.u32 %v734, 31
    %v737 = vsub.s32 32, %v736
    %v738 = vshrl.u32 683565275, %v737
    %v739 = vshll.u32 683565275, %v736
    %v740 = vshrl.u32 2475754826, %v737
    %v741 = vor.u32 %v739, %v740
    %v742 = vshll.u32 2475754826, %v736
    %v743 = vshrl.u32 2131351028, %v737
    %v744 = vor.u32 %v742, %v743
    %v745 = vshll.u32 2131351028, %v736
    %v746 = vshrl.u32 2102212464, %v737
    %v747 = vor.u32 %v745, %v746
    %v748 = vshll.u32 2102212464, %v736
    %v749 = vshrl.u32 920167782, %v737
    %v750 = vor.u32 %v748, %v749
    %v751 = vshll.u32 920167782, %v736
    %v752 = vshrl.u32 1326507024, %v737
    %v753 = vor.u32 %v751, %v752
    %vm754 = vcmp.lt.s32.totalorder %v735, 1
    %vm755 = vcmp.lt.s32.totalorder %v735, 2
    %vm756 = vcmp.lt.s32.totalorder %v735, 3
    %vm757 = vcmp.lt.s32.totalorder %v735, 4
    %v758 = vsel %vm754, %v738, %v741
    %v759 = vsel %vm757, %v747, 2102212464
    %v760 = vsel %vm756, %v744, %v759
    %v761 = vsel %vm755, %v758, %v760
    %v762 = vsel %vm754, %v741, %v744
    %v763 = vsel %vm757, %v750, 920167782
    %v764 = vsel %vm756, %v747, %v763
    %v765 = vsel %vm755, %v762, %v764
    %v766 = vsel %vm754, %v744, %v747
    %v767 = vsel %vm757, %v753, 1326507024
    %v768 = vsel %vm756, %v750, %v767
    %v769 = vsel %vm755, %v766, %v768
    %v770 = vshll.u32 %v730, 8
    %v771 = vand.u32 %v770, 65535
    %v772 = vshrl.u32 %v770, 16
    %v773 = vand.u32 %v769, 65535
    %v774 = vshrl.u32 %v769, 16
    %v775 = vmul.u32 %v771, %v773
    %v776 = vmul.u32 %v771, %v774
    %v777 = vmul.u32 %v772, %v773
    %v778 = vmul.u32 %v772, %v774
    %v779 = vshll.u32 %v776, 16
    %v780 = vshrl.u32 %v776, 16
    %v781 = vshll.u32 %v777, 16
    %v782 = vshrl.u32 %v777, 16
    %vm783 = vc.u32 %v775, %v779
    %v784 = vsel %vm783, 1, 0
    %v785 = vadd.s32 %v775, %v779
    %v786 = vadd.s32 %v778, %v784
    %vm787 = vc.u32 %v785, %v781
    %v788 = vsel %vm787, 1, 0
    %v789 = vadd.s32 %v785, %v781
    %v790 = vadd.s32 %v786, %v788
    %v791 = vadd.s32 %v790, %v780
    %v792 = vadd.s32 %v791, %v782
    %v793 = vand.u32 %v770, 65535
    %v794 = vshrl.u32 %v770, 16
    %v795 = vand.u32 %v765, 65535
    %v796 = vshrl.u32 %v765, 16
    %v797 = vmul.u32 %v793, %v795
    %v798 = vmul.u32 %v793, %v796
    %v799 = vmul.u32 %v794, %v795
    %v800 = vmul.u32 %v794, %v796
    %v801 = vshll.u32 %v798, 16
    %v802 = vshrl.u32 %v798, 16
    %v803 = vshll.u32 %v799, 16
    %v804 = vshrl.u32 %v799, 16
    %vm805 = vc.u32 %v797, %v801
    %v806 = vsel %vm805, 1, 0
    %v807 = vadd.s32 %v797, %v801
    %v808 = vadd.s32 %v800, %v806
    %vm809 = vc.u32 %v807, %v803
    %v810 = vsel %vm809, 1, 0
    %v811 = vadd.s32 %v807, %v803
    %v812 = vadd.s32 %v808, %v810
    %v813 = vadd.s32 %v812, %v802
    %v814 = vadd.s32 %v813, %v804
    %v815 = vmul.u32 %v770, %v761
    %v816 = vadd.s32 %v792, %v811
    %vm817 = vc.u32 %v792, %v811
    %v818 = vadd.s32 %v814, 1
    %v819 = vsel %vm817, %v818, %v814
    %v820 = vadd.s32 %v815, %v819
    %v821 = vadd.s32 %v820, 536870912
    %v822 = vshrl.u32 %v821, 30
    %v823 = vshll.u32 %v822, 30
    %v824 = vsub.s32 %v820, %v823
    %vm825 = vcmp.lt.s32.totalorder %v824, 0
    %v826 = vsub.s32 0, %v824
    %v827 = vsel %vm825, %v826, %v824
    %v828 = vclz %v827
    %v829 = vsub.s32 %v828, 2
    %vm830 = vcmp.gt.s32.totalorder 0, %v829
    %v831 = vsel %vm830, 0, %v829
    %v832 = vsub.s32 32, %v831
    %v833 = vshll.u32 %v824, %v831
    %v834 = vshrl.u32 %v816, %v832
    %v835 = vor.u32 %v833, %v834
    %v836 = vsub.s32 4294967266, %v831
    %v837 = vadd.s32 %v836, 127
    %v838 = vshll.u32 %v837, 23
    %v839 = vor.u32 4788187, %v838
    %v840 = vand.u32 2147483647, %v839
    %v842 = vcvt.s32.f32 %v835
    %v843 = vmul.f32 %v842, %v840
    %v844 = vxor.u32 %v843, 2147483648
    %v845 = vsel %vm724, %v844, %v843
    %v846 = vsub.s32 4, %v822
    %v847 = vsel %vm724, %v846, %v822
    %v848 = vsel %vm723, %v408, %v845
    %v849 = vsel %vm723, 0, %v847
    %v850 = vmul.f32 %v848, %v848
    %v851 = vmul.f32 %v850, -0.001358992
    %v852 = vadd.f32 %v851, 0.041655596
    %v853 = vmul.f32 %v850, %v852
    %v854 = vadd.f32 %v853, -0.4999988
    %v855 = vmul.f32 %v850, %v854
    %v856 = vadd.f32 1.0, %v855
    %v857 = vmul.f32 %v848, %v848
    %v858 = vmul.f32 %v857, -0.00019511016
    %v859 = vadd.f32 %v858, 0.008332121
    %v860 = vmul.f32 %v857, %v859
    %v861 = vadd.f32 %v860, -0.16666654
    %v862 = vmul.f32 %v857, %v861
    %v863 = vadd.f32 %v862, 1.0
    %v864 = vmul.f32 %v863, %v848
    %vm865 = vweird.f32 %v408
    %v866 = vand.u32 %v849, 3
    %vm867 = vcmp.lt.s32.totalorder %v866, 2
    %vm868 = vcmp.eq.s32.totalorder %v866, 0
    %v869 = vxor.u32 %v864, 2147483648
    %v870 = vsel %vm868, %v856, %v869
    %vm871 = vcmp.eq.s32.totalorder %v866, 2
    %v872 = vxor.u32 %v856, 2147483648
    %v873 = vsel %vm871, %v872, %v864
    %v874 = vsel %vm867, %v870, %v873
    %v875 = vsel %vm865, nan, %v874
    %v876 = vand.u32 2147483647, %v409
    %vm877 = vcmp.le.f32.partialorder %v876, 0.7853982
    %vm878 = vcmp.lt.s32.totalorder %v409, 0
    %v879 = vand.u32 %v409, 2139095040
    %v880 = vshrl.u32 %v879, 23
    %v881 = vsub.s32 %v880, 127
    %v882 = vand.u32 2147483647, %v409
    %v883 = vand.u32 %v882, 8388607
    %v884 = vor.u32 %v883, 8388608
    %v885 = vsub.s32 0, %v884
    %v886 = vadd.s32 %v881, 1
    %vm887 = vcmp.gt.s32.totalorder %v886, 0
    %v888 = vsel %vm887, %v886, 0
    %v889 = vshrl.u32 %v888, 5
    %v890 = vand.u32 %v888, 31
    %v891 = vsub.s32 32, %v890
    %v892 = vshrl.u32 683565275, %v891
    %v893 = vshll.u32 683565275, %v890
    %v894 = vshrl.u32 2475754826, %v891
    %v895 = vor.u32 %v893, %v894
    %v896 = vshll.u32 2475754826, %v890
    %v897 = vshrl.u32 2131351028, %v891
    %v898 = vor.u32 %v896, %v897
    %v899 = vshll.u32 2131351028, %v890
    %v900 = vshrl.u32 2102212464, %v891
    %v901 = vor.u32 %v899, %v900
    %v902 = vshll.u32 2102212464, %v890
    %v903 = vshrl.u32 920167782, %v891
    %v904 = vor.u32 %v902, %v903
    %v905 = vshll.u32 920167782, %v890
    %v906 = vshrl.u32 1326507024, %v891
    %v907 = vor.u32 %v905, %v906
    %vm908 = vcmp.lt.s32.totalorder %v889, 1
    %vm909 = vcmp.lt.s32.totalorder %v889, 2
    %vm910 = vcmp.lt.s32.totalorder %v889, 3
    %vm911 = vcmp.lt.s32.totalorder %v889, 4
    %v912 = vsel %vm908, %v892, %v895
    %v913 = vsel %vm911, %v901, 2102212464
    %v914 = vsel %vm910, %v898, %v913
    %v915 = vsel %vm909, %v912, %v914
    %v916 = vsel %vm908, %v895, %v898
    %v917 = vsel %vm911, %v904, 920167782
    %v918 = vsel %vm910, %v901, %v917
    %v919 = vsel %vm909, %v916, %v918
    %v920 = vsel %vm908, %v898, %v901
    %v921 = vsel %vm911, %v907, 1326507024
    %v922 = vsel %vm910, %v904, %v921
    %v923 = vsel %vm909, %v920, %v922
    %v924 = vshll.u32 %v884, 8
    %v925 = vand.u32 %v924, 65535
    %v926 = vshrl.u32 %v924, 16
    %v927 = vand.u32 %v923, 65535
    %v928 = vshrl.u32 %v923, 16
    %v929 = vmul.u32 %v925, %v927
    %v930 = vmul.u32 %v925, %v928
    %v931 = vmul.u32 %v926, %v927
    %v932 = vmul.u32 %v926, %v928
    %v933 = vshll.u32 %v930, 16
    %v934 = vshrl.u32 %v930, 16
    %v935 = vshll.u32 %v931, 16
    %v936 = vshrl.u32 %v931, 16
    %vm937 = vc.u32 %v929, %v933
    %v938 = vsel %vm937, 1, 0
    %v939 = vadd.s32 %v929, %v933
    %v940 = vadd.s32 %v932, %v938
    %vm941 = vc.u32 %v939, %v935
    %v942 = vsel %vm941, 1, 0
    %v943 = vadd.s32 %v939, %v935
    %v944 = vadd.s32 %v940, %v942
    %v945 = vadd.s32 %v944, %v934
    %v946 = vadd.s32 %v945, %v936
    %v947 = vand.u32 %v924, 65535
    %v948 = vshrl.u32 %v924, 16
    %v949 = vand.u32 %v919, 65535
    %v950 = vshrl.u32 %v919, 16
    %v951 = vmul.u32 %v947, %v949
    %v952 = vmul.u32 %v947, %v950
    %v953 = vmul.u32 %v948, %v949
    %v954 = vmul.u32 %v948, %v950
    %v955 = vshll.u32 %v952, 16
    %v956 = vshrl.u32 %v952, 16
    %v957 = vshll.u32 %v953, 16
    %v958 = vshrl.u32 %v953, 16
    %vm959 = vc.u32 %v951, %v955
    %v960 = vsel %vm959, 1, 0
    %v961 = vadd.s32 %v951, %v955
    %v962 = vadd.s32 %v954, %v960
    %vm963 = vc.u32 %v961, %v957
    %v964 = vsel %vm963, 1, 0
    %v965 = vadd.s32 %v961, %v957
    %v966 = vadd.s32 %v962, %v964
    %v967 = vadd.s32 %v966, %v956
    %v968 = vadd.s32 %v967, %v958
    %v969 = vmul.u32 %v924, %v915
    %v970 = vadd.s32 %v946, %v965
    %vm971 = vc.u32 %v946, %v965
    %v972 = vadd.s32 %v968, 1
    %v973 = vsel %vm971, %v972, %v968
    %v974 = vadd.s32 %v969, %v973
    %v975 = vadd.s32 %v974, 536870912
    %v976 = vshrl.u32 %v975, 30
    %v977 = vshll.u32 %v976, 30
    %v978 = vsub.s32 %v974, %v977
    %vm979 = vcmp.lt.s32.totalorder %v978, 0
    %v980 = vsub.s32 0, %v978
    %v981 = vsel %vm979, %v980, %v978
    %v982 = vclz %v981
    %v983 = vsub.s32 %v982, 2
    %vm984 = vcmp.gt.s32.totalorder 0, %v983
    %v985 = vsel %vm984, 0, %v983
    %v986 = vsub.s32 32, %v985
    %v987 = vshll.u32 %v978, %v985
    %v988 = vshrl.u32 %v970, %v986
    %v989 = vor.u32 %v987, %v988
    %v990 = vsub.s32 4294967266, %v985
    %v991 = vadd.s32 %v990, 127
    %v992 = vshll.u32 %v991, 23
    %v993 = vor.u32 4788187, %v992
    %v994 = vand.u32 2147483647, %v993
    %v996 = vcvt.s32.f32 %v989
    %v997 = vmul.f32 %v996, %v994
    %v998 = vxor.u32 %v997, 2147483648
    %v999 = vsel %vm878, %v998, %v997
    %v1000 = vsub.s32 4, %v976
    %v1001 = vsel %vm878, %v1000, %v976
    %v1002 = vsel %vm877, %v409, %v999
    %v1003 = vsel %vm877, 0, %v1001
    %v1004 = vmul.f32 %v1002, %v1002
    %v1005 = vmul.f32 %v1004, -0.001358992
    %v1006 = vadd.f32 %v1005, 0.041655596
    %v1007 = vmul.f32 %v1004, %v1006
    %v1008 = vadd.f32 %v1007, -0.4999988
    %v1009 = vmul.f32 %v1004, %v1008
    %v1010 = vadd.f32 1.0, %v1009
    %v1011 = vmul.f32 %v1002, %v1002
    %v1012 = vmul.f32 %v1011, -0.00019511016
    %v1013 = vadd.f32 %v1012, 0.008332121
    %v1014 = vmul.f32 %v1011, %v1013
    %v1015 = vadd.f32 %v1014, -0.16666654
    %v1016 = vmul.f32 %v1011, %v1015
    %v1017 = vadd.f32 %v1016, 1.0
    %v1018 = vmul.f32 %v1017, %v1002
    %vm1019 = vweird.f32 %v409
    %v1020 = vand.u32 %v1003, 3
    %vm1021 = vcmp.lt.s32.totalorder %v1020, 2
    %vm1022 = vcmp.eq.s32.totalorder %v1020, 0
    %v1023 = vxor.u32 %v1018, 2147483648
    %v1024 = vsel %vm1022, %v1010, %v1023
    %vm1025 = vcmp.eq.s32.totalorder %v1020, 2
    %v1026 = vxor.u32 %v1010, 2147483648
    %v1027 = vsel %vm1025, %v1026, %v1018
    %v1028 = vsel %vm1021, %v1024, %v1027
    %v1029 = vsel %vm1019, nan, %v1028
    %v1030 = vand.u32 2147483647, %v410
    %vm1031 = vcmp.le.f32.partialorder %v1030, 0.7853982
    %vm1032 = vcmp.lt.s32.totalorder %v410, 0
    %v1033 = vand.u32 %v410, 2139095040
    %v1034 = vshrl.u32 %v1033, 23
    %v1035 = vsub.s32 %v1034, 127
    %v1036 = vand.u32 2147483647, %v410
    %v1037 = vand.u32 %v1036, 8388607
    %v1038 = vor.u32 %v1037, 8388608
    %v1039 = vsub.s32 0, %v1038
    %v1040 = vadd.s32 %v1035, 1
    %vm1041 = vcmp.gt.s32.totalorder %v1040, 0
    %v1042 = vsel %vm1041, %v1040, 0
    %v1043 = vshrl.u32 %v1042, 5
    %v1044 = vand.u32 %v1042, 31
    %v1045 = vsub.s32 32, %v1044
    %v1046 = vshrl.u32 683565275, %v1045
    %v1047 = vshll.u32 683565275, %v1044
    %v1048 = vshrl.u32 2475754826, %v1045
    %v1049 = vor.u32 %v1047, %v1048
    %v1050 = vshll.u32 2475754826, %v1044
    %v1051 = vshrl.u32 2131351028, %v1045
    %v1052 = vor.u32 %v1050, %v1051
    %v1053 = vshll.u32 2131351028, %v1044
    %v1054 = vshrl.u32 2102212464, %v1045
    %v1055 = vor.u32 %v1053, %v1054
    %v1056 = vshll.u32 2102212464, %v1044
    %v1057 = vshrl.u32 920167782, %v1045
    %v1058 = vor.u32 %v1056, %v1057
    %v1059 = vshll.u32 920167782, %v1044
    %v1060 = vshrl.u32 1326507024, %v1045
    %v1061 = vor.u32 %v1059, %v1060
    %vm1062 = vcmp.lt.s32.totalorder %v1043, 1
    %vm1063 = vcmp.lt.s32.totalorder %v1043, 2
    %vm1064 = vcmp.lt.s32.totalorder %v1043, 3
    %vm1065 = vcmp.lt.s32.totalorder %v1043, 4
    %v1066 = vsel %vm1062, %v1046, %v1049
    %v1067 = vsel %vm1065, %v1055, 2102212464
    %v1068 = vsel %vm1064, %v1052, %v1067
    %v1069 = vsel %vm1063, %v1066, %v1068
    %v1070 = vsel %vm1062, %v1049, %v1052
    %v1071 = vsel %vm1065, %v1058, 920167782
    %v1072 = vsel %vm1064, %v1055, %v1071
    %v1073 = vsel %vm1063, %v1070, %v1072
    %v1074 = vsel %vm1062, %v1052, %v1055
    %v1075 = vsel %vm1065, %v1061, 1326507024
    %v1076 = vsel %vm1064, %v1058, %v1075
    %v1077 = vsel %vm1063, %v1074, %v1076
    %v1078 = vshll.u32 %v1038, 8
    %v1079 = vand.u32 %v1078, 65535
    %v1080 = vshrl.u32 %v1078, 16
    %v1081 = vand.u32 %v1077, 65535
    %v1082 = vshrl.u32 %v1077, 16
    %v1083 = vmul.u32 %v1079, %v1081
    %v1084 = vmul.u32 %v1079, %v1082
    %v1085 = vmul.u32 %v1080, %v1081
    %v1086 = vmul.u32 %v1080, %v1082
    %v1087 = vshll.u32 %v1084, 16
    %v1088 = vshrl.u32 %v1084, 16
    %v1089 = vshll.u32 %v1085, 16
    %v1090 = vshrl.u32 %v1085, 16
    %vm1091 = vc.u32 %v1083, %v1087
    %v1092 = vsel %vm1091, 1, 0
    %v1093 = vadd.s32 %v1083, %v1087
    %v1094 = vadd.s32 %v1086, %v1092
    %vm1095 = vc.u32 %v1093, %v1089
    %v1096 = vsel %vm1095, 1, 0
    %v1097 = vadd.s32 %v1093, %v1089
    %v1098 = vadd.s32 %v1094, %v1096
    %v1099 = vadd.s32 %v1098, %v1088
    %v1100 = vadd.s32 %v1099, %v1090
    %v1101 = vand.u32 %v1078, 65535
    %v1102 = vshrl.u32 %v1078, 16
    %v1103 = vand.u32 %v1073, 65535
    %v1104 = vshrl.u32 %v1073, 16
    %v1105 = vmul.u32 %v1101, %v1103
    %v1106 = vmul.u32 %v1101, %v1104
    %v1107 = vmul.u32 %v1102, %v1103
    %v1108 = vmul.u32 %v1102, %v1104
    %v1109 = vshll.u32 %v1106, 16
    %v1110 = vshrl.u32 %v1106, 16
    %v1111 = vshll.u32 %v1107, 16
    %v1112 = vshrl.u32 %v1107, 16
    %vm1113 = vc.u32 %v1105, %v1109
    %v1114 = vsel %vm1113, 1, 0
    %v1115 = vadd.s32 %v1105, %v1109
    %v1116 = vadd.s32 %v1108, %v1114
    %vm1117 = vc.u32 %v1115, %v1111
    %v1118 = vsel %vm1117, 1, 0
    %v1119 = vadd.s32 %v1115, %v1111
    %v1120 = vadd.s32 %v1116, %v1118
    %v1121 = vadd.s32 %v1120, %v1110
    %v1122 = vadd.s32 %v1121, %v1112
    %v1123 = vmul.u32 %v1078, %v1069
    %v1124 = vadd.s32 %v1100, %v1119
    %vm1125 = vc.u32 %v1100, %v1119
    %v1126 = vadd.s32 %v1122, 1
    %v1127 = vsel %vm1125, %v1126, %v1122
    %v1128 = vadd.s32 %v1123, %v1127
    %v1129 = vadd.s32 %v1128, 536870912
    %v1130 = vshrl.u32 %v1129, 30
    %v1131 = vshll.u32 %v1130, 30
    %v1132 = vsub.s32 %v1128, %v1131
    %vm1133 = vcmp.lt.s32.totalorder %v1132, 0
    %v1134 = vsub.s32 0, %v1132
    %v1135 = vsel %vm1133, %v1134, %v1132
    %v1136 = vclz %v1135
    %v1137 = vsub.s32 %v1136, 2
    %vm1138 = vcmp.gt.s32.totalorder 0, %v1137
    %v1139 = vsel %vm1138, 0, %v1137
    %v1140 = vsub.s32 32, %v1139
    %v1141 = vshll.u32 %v1132, %v1139
    %v1142 = vshrl.u32 %v1124, %v1140
    %v1143 = vor.u32 %v1141, %v1142
    %v1144 = vsub.s32 4294967266, %v1139
    %v1145 = vadd.s32 %v1144, 127
    %v1146 = vshll.u32 %v1145, 23
    %v1147 = vor.u32 4788187, %v1146
    %v1148 = vand.u32 2147483647, %v1147
    %v1150 = vcvt.s32.f32 %v1143
    %v1151 = vmul.f32 %v1150, %v1148
    %v1152 = vxor.u32 %v1151, 2147483648
    %v1153 = vsel %vm1032, %v1152, %v1151
    %v1154 = vsub.s32 4, %v1130
    %v1155 = vsel %vm1032, %v1154, %v1130
    %v1156 = vsel %vm1031, %v410, %v1153
    %v1157 = vsel %vm1031, 0, %v1155
    %v1158 = vmul.f32 %v1156, %v1156
    %v1159 = vmul.f32 %v1158, -0.001358992
    %v1160 = vadd.f32 %v1159, 0.041655596
    %v1161 = vmul.f32 %v1158, %v1160
    %v1162 = vadd.f32 %v1161, -0.4999988
    %v1163 = vmul.f32 %v1158, %v1162
    %v1164 = vadd.f32 1.0, %v1163
    %v1165 = vmul.f32 %v1156, %v1156
    %v1166 = vmul.f32 %v1165, -0.00019511016
    %v1167 = vadd.f32 %v1166, 0.008332121
    %v1168 = vmul.f32 %v1165, %v1167
    %v1169 = vadd.f32 %v1168, -0.16666654
    %v1170 = vmul.f32 %v1165, %v1169
    %v1171 = vadd.f32 %v1170, 1.0
    %v1172 = vmul.f32 %v1171, %v1156
    %vm1173 = vweird.f32 %v410
    %v1174 = vand.u32 %v1157, 3
    %vm1175 = vcmp.lt.s32.totalorder %v1174, 2
    %vm1176 = vcmp.eq.s32.totalorder %v1174, 0
    %v1177 = vxor.u32 %v1172, 2147483648
    %v1178 = vsel %vm1176, %v1164, %v1177
    %vm1179 = vcmp.eq.s32.totalorder %v1174, 2
    %v1180 = vxor.u32 %v1164, 2147483648
    %v1181 = vsel %vm1179, %v1180, %v1172
    %v1182 = vsel %vm1175, %v1178, %v1181
    %v1183 = vsel %vm1173, nan, %v1182
    %v1184 = vand.u32 2147483647, %v411
    %vm1185 = vcmp.le.f32.partialorder %v1184, 0.7853982
    %vm1186 = vcmp.lt.s32.totalorder %v411, 0
    %v1187 = vand.u32 %v411, 2139095040
    %v1188 = vshrl.u32 %v1187, 23
    %v1189 = vsub.s32 %v1188, 127
    %v1190 = vand.u32 2147483647, %v411
    %v1191 = vand.u32 %v1190, 8388607
    %v1192 = vor.u32 %v1191, 8388608
    %v1193 = vsub.s32 0, %v1192
    %v1194 = vadd.s32 %v1189, 1
    %vm1195 = vcmp.gt.s32.totalorder %v1194, 0
    %v1196 = vsel %vm1195, %v1194, 0
    %v1197 = vshrl.u32 %v1196, 5
    %v1198 = vand.u32 %v1196, 31
    %v1199 = vsub.s32 32, %v1198
    %v1200 = vshrl.u32 683565275, %v1199
    %v1201 = vshll.u32 683565275, %v1198
    %v1202 = vshrl.u32 2475754826, %v1199
    %v1203 = vor.u32 %v1201, %v1202
    %v1204 = vshll.u32 2475754826, %v1198
    %v1205 = vshrl.u32 2131351028, %v1199
    %v1206 = vor.u32 %v1204, %v1205
    %v1207 = vshll.u32 2131351028, %v1198
    %v1208 = vshrl.u32 2102212464, %v1199
    %v1209 = vor.u32 %v1207, %v1208
    %v1210 = vshll.u32 2102212464, %v1198
    %v1211 = vshrl.u32 920167782, %v1199
    %v1212 = vor.u32 %v1210, %v1211
    %v1213 = vshll.u32 920167782, %v1198
    %v1214 = vshrl.u32 1326507024, %v1199
    %v1215 = vor.u32 %v1213, %v1214
    %vm1216 = vcmp.lt.s32.totalorder %v1197, 1
    %vm1217 = vcmp.lt.s32.totalorder %v1197, 2
    %vm1218 = vcmp.lt.s32.totalorder %v1197, 3
    %vm1219 = vcmp.lt.s32.totalorder %v1197, 4
    %v1220 = vsel %vm1216, %v1200, %v1203
    %v1221 = vsel %vm1219, %v1209, 2102212464
    %v1222 = vsel %vm1218, %v1206, %v1221
    %v1223 = vsel %vm1217, %v1220, %v1222
    %v1224 = vsel %vm1216, %v1203, %v1206
    %v1225 = vsel %vm1219, %v1212, 920167782
    %v1226 = vsel %vm1218, %v1209, %v1225
    %v1227 = vsel %vm1217, %v1224, %v1226
    %v1228 = vsel %vm1216, %v1206, %v1209
    %v1229 = vsel %vm1219, %v1215, 1326507024
    %v1230 = vsel %vm1218, %v1212, %v1229
    %v1231 = vsel %vm1217, %v1228, %v1230
    %v1232 = vshll.u32 %v1192, 8
    %v1233 = vand.u32 %v1232, 65535
    %v1234 = vshrl.u32 %v1232, 16
    %v1235 = vand.u32 %v1231, 65535
    %v1236 = vshrl.u32 %v1231, 16
    %v1237 = vmul.u32 %v1233, %v1235
    %v1238 = vmul.u32 %v1233, %v1236
    %v1239 = vmul.u32 %v1234, %v1235
    %v1240 = vmul.u32 %v1234, %v1236
    %v1241 = vshll.u32 %v1238, 16
    %v1242 = vshrl.u32 %v1238, 16
    %v1243 = vshll.u32 %v1239, 16
    %v1244 = vshrl.u32 %v1239, 16
    %vm1245 = vc.u32 %v1237, %v1241
    %v1246 = vsel %vm1245, 1, 0
    %v1247 = vadd.s32 %v1237, %v1241
    %v1248 = vadd.s32 %v1240, %v1246
    %vm1249 = vc.u32 %v1247, %v1243
    %v1250 = vsel %vm1249, 1, 0
    %v1251 = vadd.s32 %v1247, %v1243
    %v1252 = vadd.s32 %v1248, %v1250
    %v1253 = vadd.s32 %v1252, %v1242
    %v1254 = vadd.s32 %v1253, %v1244
    %v1255 = vand.u32 %v1232, 65535
    %v1256 = vshrl.u32 %v1232, 16
    %v1257 = vand.u32 %v1227, 65535
    %v1258 = vshrl.u32 %v1227, 16
    %v1259 = vmul.u32 %v1255, %v1257
    %v1260 = vmul.u32 %v1255, %v1258
    %v1261 = vmul.u32 %v1256, %v1257
    %v1262 = vmul.u32 %v1256, %v1258
    %v1263 = vshll.u32 %v1260, 16
    %v1264 = vshrl.u32 %v1260, 16
    %v1265 = vshll.u32 %v1261, 16
    %v1266 = vshrl.u32 %v1261, 16
    %vm1267 = vc.u32 %v1259, %v1263
    %v1268 = vsel %vm1267, 1, 0
    %v1269 = vadd.s32 %v1259, %v1263
    %v1270 = vadd.s32 %v1262, %v1268
    %vm1271 = vc.u32 %v1269, %v1265
    %v1272 = vsel %vm1271, 1, 0
    %v1273 = vadd.s32 %v1269, %v1265
    %v1274 = vadd.s32 %v1270, %v1272
    %v1275 = vadd.s32 %v1274, %v1264
    %v1276 = vadd.s32 %v1275, %v1266
    %v1277 = vmul.u32 %v1232, %v1223
    %v1278 = vadd.s32 %v1254, %v1273
    %vm1279 = vc.u32 %v1254, %v1273
    %v1280 = vadd.s32 %v1276, 1
    %v1281 = vsel %vm1279, %v1280, %v1276
    %v1282 = vadd.s32 %v1277, %v1281
    %v1283 = vadd.s32 %v1282, 536870912
    %v1284 = vshrl.u32 %v1283, 30
    %v1285 = vshll.u32 %v1284, 30
    %v1286 = vsub.s32 %v1282, %v1285
    %vm1287 = vcmp.lt.s32.totalorder %v1286, 0
    %v1288 = vsub.s32 0, %v1286
    %v1289 = vsel %vm1287, %v1288, %v1286
    %v1290 = vclz %v1289
    %v1291 = vsub.s32 %v1290, 2
    %vm1292 = vcmp.gt.s32.totalorder 0, %v1291
    %v1293 = vsel %vm1292, 0, %v1291
    %v1294 = vsub.s32 32, %v1293
    %v1295 = vshll.u32 %v1286, %v1293
    %v1296 = vshrl.u32 %v1278, %v1294
    %v1297 = vor.u32 %v1295, %v1296
    %v1298 = vsub.s32 4294967266, %v1293
    %v1299 = vadd.s32 %v1298, 127
    %v1300 = vshll.u32 %v1299, 23
    %v1301 = vor.u32 4788187, %v1300
    %v1302 = vand.u32 2147483647, %v1301
    %v1304 = vcvt.s32.f32 %v1297
    %v1305 = vmul.f32 %v1304, %v1302
    %v1306 = vxor.u32 %v1305, 2147483648
    %v1307 = vsel %vm1186, %v1306, %v1305
    %v1308 = vsub.s32 4, %v1284
    %v1309 = vsel %vm1186, %v1308, %v1284
    %v1310 = vsel %vm1185, %v411, %v1307
    %v1311 = vsel %vm1185, 0, %v1309
    %v1312 = vmul.f32 %v1310, %v1310
    %v1313 = vmul.f32 %v1312, -0.001358992
    %v1314 = vadd.f32 %v1313, 0.041655596
    %v1315 = vmul.f32 %v1312, %v1314
    %v1316 = vadd.f32 %v1315, -0.4999988
    %v1317 = vmul.f32 %v1312, %v1316
    %v1318 = vadd.f32 1.0, %v1317
    %v1319 = vmul.f32 %v1310, %v1310
    %v1320 = vmul.f32 %v1319, -0.00019511016
    %v1321 = vadd.f32 %v1320, 0.008332121
    %v1322 = vmul.f32 %v1319, %v1321
    %v1323 = vadd.f32 %v1322, -0.16666654
    %v1324 = vmul.f32 %v1319, %v1323
    %v1325 = vadd.f32 %v1324, 1.0
    %v1326 = vmul.f32 %v1325, %v1310
    %vm1327 = vweird.f32 %v411
    %v1328 = vand.u32 %v1311, 3
    %vm1329 = vcmp.lt.s32.totalorder %v1328, 2
    %vm1330 = vcmp.eq.s32.totalorder %v1328, 0
    %v1331 = vxor.u32 %v1326, 2147483648
    %v1332 = vsel %vm1330, %v1318, %v1331
    %vm1333 = vcmp.eq.s32.totalorder %v1328, 2
    %v1334 = vxor.u32 %v1318, 2147483648
    %v1335 = vsel %vm1333, %v1334, %v1326
    %v1336 = vsel %vm1329, %v1332, %v1335
    %v1337 = vsel %vm1327, nan, %v1336
    %v1338 = vand.u32 2147483647, %v412
    %vm1339 = vcmp.le.f32.partialorder %v1338, 0.7853982
    %vm1340 = vcmp.lt.s32.totalorder %v412, 0
    %v1341 = vand.u32 %v412, 2139095040
    %v1342 = vshrl.u32 %v1341, 23
    %v1343 = vsub.s32 %v1342, 127
    %v1344 = vand.u32 2147483647, %v412
    %v1345 = vand.u32 %v1344, 8388607
    %v1346 = vor.u32 %v1345, 8388608
    %v1347 = vsub.s32 0, %v1346
    %v1348 = vadd.s32 %v1343, 1
    %vm1349 = vcmp.gt.s32.totalorder %v1348, 0
    %v1350 = vsel %vm1349, %v1348, 0
    %v1351 = vshrl.u32 %v1350, 5
    %v1352 = vand.u32 %v1350, 31
    %v1353 = vsub.s32 32, %v1352
    %v1354 = vshrl.u32 683565275, %v1353
    %v1355 = vshll.u32 683565275, %v1352
    %v1356 = vshrl.u32 2475754826, %v1353
    %v1357 = vor.u32 %v1355, %v1356
    %v1358 = vshll.u32 2475754826, %v1352
    %v1359 = vshrl.u32 2131351028, %v1353
    %v1360 = vor.u32 %v1358, %v1359
    %v1361 = vshll.u32 2131351028, %v1352
    %v1362 = vshrl.u32 2102212464, %v1353
    %v1363 = vor.u32 %v1361, %v1362
    %v1364 = vshll.u32 2102212464, %v1352
    %v1365 = vshrl.u32 920167782, %v1353
    %v1366 = vor.u32 %v1364, %v1365
    %v1367 = vshll.u32 920167782, %v1352
    %v1368 = vshrl.u32 1326507024, %v1353
    %v1369 = vor.u32 %v1367, %v1368
    %vm1370 = vcmp.lt.s32.totalorder %v1351, 1
    %vm1371 = vcmp.lt.s32.totalorder %v1351, 2
    %vm1372 = vcmp.lt.s32.totalorder %v1351, 3
    %vm1373 = vcmp.lt.s32.totalorder %v1351, 4
    %v1374 = vsel %vm1370, %v1354, %v1357
    %v1375 = vsel %vm1373, %v1363, 2102212464
    %v1376 = vsel %vm1372, %v1360, %v1375
    %v1377 = vsel %vm1371, %v1374, %v1376
    %v1378 = vsel %vm1370, %v1357, %v1360
    %v1379 = vsel %vm1373, %v1366, 920167782
    %v1380 = vsel %vm1372, %v1363, %v1379
    %v1381 = vsel %vm1371, %v1378, %v1380
    %v1382 = vsel %vm1370, %v1360, %v1363
    %v1383 = vsel %vm1373, %v1369, 1326507024
    %v1384 = vsel %vm1372, %v1366, %v1383
    %v1385 = vsel %vm1371, %v1382, %v1384
    %v1386 = vshll.u32 %v1346, 8
    %v1387 = vand.u32 %v1386, 65535
    %v1388 = vshrl.u32 %v1386, 16
    %v1389 = vand.u32 %v1385, 65535
    %v1390 = vshrl.u32 %v1385, 16
    %v1391 = vmul.u32 %v1387, %v1389
    %v1392 = vmul.u32 %v1387, %v1390
    %v1393 = vmul.u32 %v1388, %v1389
    %v1394 = vmul.u32 %v1388, %v1390
    %v1395 = vshll.u32 %v1392, 16
    %v1396 = vshrl.u32 %v1392, 16
    %v1397 = vshll.u32 %v1393, 16
    %v1398 = vshrl.u32 %v1393, 16
    %vm1399 = vc.u32 %v1391, %v1395
    %v1400 = vsel %vm1399, 1, 0
    %v1401 = vadd.s32 %v1391, %v1395
    %v1402 = vadd.s32 %v1394, %v1400
    %vm1403 = vc.u32 %v1401, %v1397
    %v1404 = vsel %vm1403, 1, 0
    %v1405 = vadd.s32 %v1401, %v1397
    %v1406 = vadd.s32 %v1402, %v1404
    %v1407 = vadd.s32 %v1406, %v1396
    %v1408 = vadd.s32 %v1407, %v1398
    %v1409 = vand.u32 %v1386, 65535
    %v1410 = vshrl.u32 %v1386, 16
    %v1411 = vand.u32 %v1381, 65535
    %v1412 = vshrl.u32 %v1381, 16
    %v1413 = vmul.u32 %v1409, %v1411
    %v1414 = vmul.u32 %v1409, %v1412
    %v1415 = vmul.u32 %v1410, %v1411
    %v1416 = vmul.u32 %v1410, %v1412
    %v1417 = vshll.u32 %v1414, 16
    %v1418 = vshrl.u32 %v1414, 16
    %v1419 = vshll.u32 %v1415, 16
    %v1420 = vshrl.u32 %v1415, 16
    %vm1421 = vc.u32 %v1413, %v1417
    %v1422 = vsel %vm1421, 1, 0
    %v1423 = vadd.s32 %v1413, %v1417
    %v1424 = vadd.s32 %v1416, %v1422
    %vm1425 = vc.u32 %v1423, %v1419
    %v1426 = vsel %vm1425, 1, 0
    %v1427 = vadd.s32 %v1423, %v1419
    %v1428 = vadd.s32 %v1424, %v1426
    %v1429 = vadd.s32 %v1428, %v1418
    %v1430 = vadd.s32 %v1429, %v1420
    %v1431 = vmul.u32 %v1386, %v1377
    %v1432 = vadd.s32 %v1408, %v1427
    %vm1433 = vc.u32 %v1408, %v1427
    %v1434 = vadd.s32 %v1430, 1
    %v1435 = vsel %vm1433, %v1434, %v1430
    %v1436 = vadd.s32 %v1431, %v1435
    %v1437 = vadd.s32 %v1436, 536870912
    %v1438 = vshrl.u32 %v1437, 30
    %v1439 = vshll.u32 %v1438, 30
    %v1440 = vsub.s32 %v1436, %v1439
    %vm1441 = vcmp.lt.s32.totalorder %v1440, 0
    %v1442 = vsub.s32 0, %v1440
    %v1443 = vsel %vm1441, %v1442, %v1440
    %v1444 = vclz %v1443
    %v1445 = vsub.s32 %v1444, 2
    %vm1446 = vcmp.gt.s32.totalorder 0, %v1445
    %v1447 = vsel %vm1446, 0, %v1445
    %v1448 = vsub.s32 32, %v1447
    %v1449 = vshll.u32 %v1440, %v1447
    %v1450 = vshrl.u32 %v1432, %v1448
    %v1451 = vor.u32 %v1449, %v1450
    %v1452 = vsub.s32 4294967266, %v1447
    %v1453 = vadd.s32 %v1452, 127
    %v1454 = vshll.u32 %v1453, 23
    %v1455 = vor.u32 4788187, %v1454
    %v1456 = vand.u32 2147483647, %v1455
    %v1458 = vcvt.s32.f32 %v1451
    %v1459 = vmul.f32 %v1458, %v1456
    %v1460 = vxor.u32 %v1459, 2147483648
    %v1461 = vsel %vm1340, %v1460, %v1459
    %v1462 = vsub.s32 4, %v1438
    %v1463 = vsel %vm1340, %v1462, %v1438
    %v1464 = vsel %vm1339, %v412, %v1461
    %v1465 = vsel %vm1339, 0, %v1463
    %v1466 = vmul.f32 %v1464, %v1464
    %v1467 = vmul.f32 %v1466, -0.001358992
    %v1468 = vadd.f32 %v1467, 0.041655596
    %v1469 = vmul.f32 %v1466, %v1468
    %v1470 = vadd.f32 %v1469, -0.4999988
    %v1471 = vmul.f32 %v1466, %v1470
    %v1472 = vadd.f32 1.0, %v1471
    %v1473 = vmul.f32 %v1464, %v1464
    %v1474 = vmul.f32 %v1473, -0.00019511016
    %v1475 = vadd.f32 %v1474, 0.008332121
    %v1476 = vmul.f32 %v1473, %v1475
    %v1477 = vadd.f32 %v1476, -0.16666654
    %v1478 = vmul.f32 %v1473, %v1477
    %v1479 = vadd.f32 %v1478, 1.0
    %v1480 = vmul.f32 %v1479, %v1464
    %vm1481 = vweird.f32 %v412
    %v1482 = vand.u32 %v1465, 3
    %vm1483 = vcmp.lt.s32.totalorder %v1482, 2
    %vm1484 = vcmp.eq.s32.totalorder %v1482, 0
    %v1485 = vxor.u32 %v1480, 2147483648
    %v1486 = vsel %vm1484, %v1472, %v1485
    %vm1487 = vcmp.eq.s32.totalorder %v1482, 2
    %v1488 = vxor.u32 %v1472, 2147483648
    %v1489 = vsel %vm1487, %v1488, %v1480
    %v1490 = vsel %vm1483, %v1486, %v1489
    %v1491 = vsel %vm1481, nan, %v1490
    %v1492 = vand.u32 2147483647, %v413
    %vm1493 = vcmp.le.f32.partialorder %v1492, 0.7853982
    %vm1494 = vcmp.lt.s32.totalorder %v413, 0
    %v1495 = vand.u32 %v413, 2139095040
    %v1496 = vshrl.u32 %v1495, 23
    %v1497 = vsub.s32 %v1496, 127
    %v1498 = vand.u32 2147483647, %v413
    %v1499 = vand.u32 %v1498, 8388607
    %v1500 = vor.u32 %v1499, 8388608
    %v1501 = vsub.s32 0, %v1500
    %v1502 = vadd.s32 %v1497, 1
    %vm1503 = vcmp.gt.s32.totalorder %v1502, 0
    %v1504 = vsel %vm1503, %v1502, 0
    %v1505 = vshrl.u32 %v1504, 5
    %v1506 = vand.u32 %v1504, 31
    %v1507 = vsub.s32 32, %v1506
    %v1508 = vshrl.u32 683565275, %v1507
    %v1509 = vshll.u32 683565275, %v1506
    %v1510 = vshrl.u32 2475754826, %v1507
    %v1511 = vor.u32 %v1509, %v1510
    %v1512 = vshll.u32 2475754826, %v1506
    %v1513 = vshrl.u32 2131351028, %v1507
    %v1514 = vor.u32 %v1512, %v1513
    %v1515 = vshll.u32 2131351028, %v1506
    %v1516 = vshrl.u32 2102212464, %v1507
    %v1517 = vor.u32 %v1515, %v1516
    %v1518 = vshll.u32 2102212464, %v1506
    %v1519 = vshrl.u32 920167782, %v1507
    %v1520 = vor.u32 %v1518, %v1519
    %v1521 = vshll.u32 920167782, %v1506
    %v1522 = vshrl.u32 1326507024, %v1507
    %v1523 = vor.u32 %v1521, %v1522
    %vm1524 = vcmp.lt.s32.totalorder %v1505, 1
    %vm1525 = vcmp.lt.s32.totalorder %v1505, 2
    %vm1526 = vcmp.lt.s32.totalorder %v1505, 3
    %vm1527 = vcmp.lt.s32.totalorder %v1505, 4
    %v1528 = vsel %vm1524, %v1508, %v1511
    %v1529 = vsel %vm1527, %v1517, 2102212464
    %v1530 = vsel %vm1526, %v1514, %v1529
    %v1531 = vsel %vm1525, %v1528, %v1530
    %v1532 = vsel %vm1524, %v1511, %v1514
    %v1533 = vsel %vm1527, %v1520, 920167782
    %v1534 = vsel %vm1526, %v1517, %v1533
    %v1535 = vsel %vm1525, %v1532, %v1534
    %v1536 = vsel %vm1524, %v1514, %v1517
    %v1537 = vsel %vm1527, %v1523, 1326507024
    %v1538 = vsel %vm1526, %v1520, %v1537
    %v1539 = vsel %vm1525, %v1536, %v1538
    %v1540 = vshll.u32 %v1500, 8
    %v1541 = vand.u32 %v1540, 65535
    %v1542 = vshrl.u32 %v1540, 16
    %v1543 = vand.u32 %v1539, 65535
    %v1544 = vshrl.u32 %v1539, 16
    %v1545 = vmul.u32 %v1541, %v1543
    %v1546 = vmul.u32 %v1541, %v1544
    %v1547 = vmul.u32 %v1542, %v1543
    %v1548 = vmul.u32 %v1542, %v1544
    %v1549 = vshll.u32 %v1546, 16
    %v1550 = vshrl.u32 %v1546, 16
    %v1551 = vshll.u32 %v1547, 16
    %v1552 = vshrl.u32 %v1547, 16
    %vm1553 = vc.u32 %v1545, %v1549
    %v1554 = vsel %vm1553, 1, 0
    %v1555 = vadd.s32 %v1545, %v1549
    %v1556 = vadd.s32 %v1548, %v1554
    %vm1557 = vc.u32 %v1555, %v1551
    %v1558 = vsel %vm1557, 1, 0
    %v1559 = vadd.s32 %v1555, %v1551
    %v1560 = vadd.s32 %v1556, %v1558
    %v1561 = vadd.s32 %v1560, %v1550
    %v1562 = vadd.s32 %v1561, %v1552
    %v1563 = vand.u32 %v1540, 65535
    %v1564 = vshrl.u32 %v1540, 16
    %v1565 = vand.u32 %v1535, 65535
    %v1566 = vshrl.u32 %v1535, 16
    %v1567 = vmul.u32 %v1563, %v1565
    %v1568 = vmul.u32 %v1563, %v1566
    %v1569 = vmul.u32 %v1564, %v1565
    %v1570 = vmul.u32 %v1564, %v1566
    %v1571 = vshll.u32 %v1568, 16
    %v1572 = vshrl.u32 %v1568, 16
    %v1573 = vshll.u32 %v1569, 16
    %v1574 = vshrl.u32 %v1569, 16
    %vm1575 = vc.u32 %v1567, %v1571
    %v1576 = vsel %vm1575, 1, 0
    %v1577 = vadd.s32 %v1567, %v1571
    %v1578 = vadd.s32 %v1570, %v1576
    %vm1579 = vc.u32 %v1577, %v1573
    %v1580 = vsel %vm1579, 1, 0
    %v1581 = vadd.s32 %v1577, %v1573
    %v1582 = vadd.s32 %v1578, %v1580
    %v1583 = vadd.s32 %v1582, %v1572
    %v1584 = vadd.s32 %v1583, %v1574
    %v1585 = vmul.u32 %v1540, %v1531
    %v1586 = vadd.s32 %v1562, %v1581
    %vm1587 = vc.u32 %v1562, %v1581
    %v1588 = vadd.s32 %v1584, 1
    %v1589 = vsel %vm1587, %v1588, %v1584
    %v1590 = vadd.s32 %v1585, %v1589
    %v1591 = vadd.s32 %v1590, 536870912
    %v1592 = vshrl.u32 %v1591, 30
    %v1593 = vshll.u32 %v1592, 30
    %v1594 = vsub.s32 %v1590, %v1593
    %vm1595 = vcmp.lt.s32.totalorder %v1594, 0
    %v1596 = vsub.s32 0, %v1594
    %v1597 = vsel %vm1595, %v1596, %v1594
    %v1598 = vclz %v1597
    %v1599 = vsub.s32 %v1598, 2
    %vm1600 = vcmp.gt.s32.totalorder 0, %v1599
    %v1601 = vsel %vm1600, 0, %v1599
    %v1602 = vsub.s32 32, %v1601
    %v1603 = vshll.u32 %v1594, %v1601
    %v1604 = vshrl.u32 %v1586, %v1602
    %v1605 = vor.u32 %v1603, %v1604
    %v1606 = vsub.s32 4294967266, %v1601
    %v1607 = vadd.s32 %v1606, 127
    %v1608 = vshll.u32 %v1607, 23
    %v1609 = vor.u32 4788187, %v1608
    %v1610 = vand.u32 2147483647, %v1609
    %v1612 = vcvt.s32.f32 %v1605
    %v1613 = vmul.f32 %v1612, %v1610
    %v1614 = vxor.u32 %v1613, 2147483648
    %v1615 = vsel %vm1494, %v1614, %v1613
    %v1616 = vsub.s32 4, %v1592
    %v1617 = vsel %vm1494, %v1616, %v1592
    %v1618 = vsel %vm1493, %v413, %v1615
    %v1619 = vsel %vm1493, 0, %v1617
    %v1620 = vmul.f32 %v1618, %v1618
    %v1621 = vmul.f32 %v1620, -0.001358992
    %v1622 = vadd.f32 %v1621, 0.041655596
    %v1623 = vmul.f32 %v1620, %v1622
    %v1624 = vadd.f32 %v1623, -0.4999988
    %v1625 = vmul.f32 %v1620, %v1624
    %v1626 = vadd.f32 1.0, %v1625
    %v1627 = vmul.f32 %v1618, %v1618
    %v1628 = vmul.f32 %v1627, -0.00019511016
    %v1629 = vadd.f32 %v1628, 0.008332121
    %v1630 = vmul.f32 %v1627, %v1629
    %v1631 = vadd.f32 %v1630, -0.16666654
    %v1632 = vmul.f32 %v1627, %v1631
    %v1633 = vadd.f32 %v1632, 1.0
    %v1634 = vmul.f32 %v1633, %v1618
    %vm1635 = vweird.f32 %v413
    %v1636 = vand.u32 %v1619, 3
    %vm1637 = vcmp.lt.s32.totalorder %v1636, 2
    %vm1638 = vcmp.eq.s32.totalorder %v1636, 0
    %v1639 = vxor.u32 %v1634, 2147483648
    %v1640 = vsel %vm1638, %v1626, %v1639
    %vm1641 = vcmp.eq.s32.totalorder %v1636, 2
    %v1642 = vxor.u32 %v1626, 2147483648
    %v1643 = vsel %vm1641, %v1642, %v1634
    %v1644 = vsel %vm1637, %v1640, %v1643
    %v1645 = vsel %vm1635, nan, %v1644
    %v1646 = vmul.f32 %v321, %v567
    %v1647 = vmul.f32 %v333, %v721
    %v1648 = vmul.f32 %v345, %v875
    %v1649 = vmul.f32 %v357, %v1029
    %v1650 = vmul.f32 %v369, %v1183
    %v1651 = vmul.f32 %v381, %v1337
    %v1652 = vmul.f32 %v393, %v1491
    %v1653 = vmul.f32 %v405, %v1645
    %v1654 = vstv %s19
    %v1655 = vmul.f32 %v1646, %v1654
    %v1656 = vmul.f32 %v1647, %v1654
    %v1657 = vmul.f32 %v1648, %v1654
    %v1658 = vmul.f32 %v1649, %v1654
    %v1659 = vmul.f32 %v1650, %v1654
    %v1660 = vmul.f32 %v1651, %v1654
    %v1661 = vmul.f32 %v1652, %v1654
    %v1662 = vmul.f32 %v1653, %v1654
    %v1663 = vstv %s18
    %v1664 = vadd.f32 %v1655, %v1663
    %v1665 = vadd.f32 %v1656, %v1663
    %v1666 = vadd.f32 %v1657, %v1663
    %v1667 = vadd.f32 %v1658, %v1663
    %v1668 = vadd.f32 %v1659, %v1663
    %v1669 = vadd.f32 %v1660, %v1663
    %v1670 = vadd.f32 %v1661, %v1663
    %v1671 = vadd.f32 %v1662, %v1663
    %v1680 = vrot.slane %v1665, 6
    %v1681 = vrot.slane %v1666, 4
    %v1682 = vrot.slane %v1667, 2
    %v1683 = vrot.slane %v1669, 6
    %v1684 = vrot.slane %v1670, 4
    %v1685 = vrot.slane %v1671, 2
    %vm1686 = vcmask 1041408
    %v1687 = vsel %vm1686, %v1664, %v1680
    %vm1688 = vcmask 1045508
    %v1689 = vsel %vm1688, %v1681, %v1682
    %vm1690 = vcmask 1043456
    %v1691 = vsel %vm1690, %v1687, %v1689
    %v1692 = vsel %vm1686, %v1668, %v1683
    %v1693 = vsel %vm1688, %v1684, %v1685
    %v1694 = vsel %vm1690, %v1692, %v1693
    %1697 = vst [vmem:[#allocation5] sm:$0xff] %v1691
    %1698 = vst [vmem:[#allocation5 + $0x8] sm:$0xff] %v1694
    // Predicated region
    $region14: #{tpu_custom_call.1} parent=1 // pred_check
      _
    $region15: #{tpu_custom_call.1} parent=1 // pred_check_branch
      %1700 = sbr.rel (0) target = $region17
    $region16: #{tpu_custom_call.1} parent=1 // pred_region
      %1702 = vsyncadd [#allocation6], 0
      %s1704 = sshll.u32 [#allocation5], 4
      %s1705 = int_to_ptr.vmem [resolvable:$true] %s1704
      %s1706 = sshll.u32 %s3, 4
      %s1707 = int_to_ptr.hbm [resolvable:$true] %s1706
      %1709 = dma.vmem_to_hbm [thread:$0]  %s1705, 256, %s1707, [#allocation6]
    $region17: #{tpu_custom_call.1} parent=1 // pred_fallthru
      _
    // Predicated region
    $region18: #{tpu_custom_call.1} parent=1 // pred_check
      _
    $region19: #{tpu_custom_call.1} parent=1 // pred_check_branch
      %1711 = sbr.rel (0) target = $region21
    $region20: #{tpu_custom_call.1} parent=1 // pred_region
      %1713 = dma.done [#allocation6], 256
    $region21: #{tpu_custom_call.1} parent=1 // pred_fallthru
      _
    %1714 = vsyncpa [#allocation6], 1

</llo_original>
